<compile_context>
chip_gen: v6e
topology: v6e:2x2x1
jax: 0.10.0
libtpu: 0.0.40
codegen_flags: <defaults>
</compile_context>

<pallas_src>
import functools

import numpy as np
import jax
import jax.numpy as jnp
from jax.experimental import pallas as pl
from jax.experimental.pallas import tpu as pltpu


# ------------------------------- helpers ------------------------------------

def _round_up(x, m):
    return ((x + m - 1) // m) * m


def _conv_out_size(h, kernel, stride, padding):
    return (h + 2 * padding - kernel) // stride + 1


def _conv_to_dense(w_oikk, b_o, in_hw, stride, padding):
    """Unroll a Conv2d into a dense (Cin*H*W, Cout*OH*OW) matmul operator.

    Row order is the NCHW flatten of the input ([ci, h, w]); column order is the
    NCHW flatten of the output ([co, oh, ow]) -- the same order PyTorch's
    .view() uses.  Zero padding of the convolution is baked in (out-of-range
    taps simply never appear in the matrix).  Built once with numpy at init.
    """
    w = np.asarray(w_oikk, dtype=np.float32)
    b = np.asarray(b_o, dtype=np.float32)
    cout, cin, k, _ = w.shape
    H, W = in_hw
    OH = _conv_out_size(H, k, stride, padding)
    OW = _conv_out_size(W, k, stride, padding)
    dense = np.zeros((cin * H * W, cout * OH * OW), np.float32)
    ci_idx = np.arange(cin)
    co_idx = np.arange(cout)
    for oh in range(OH):
        for ow in range(OW):
            cols = co_idx * (OH * OW) + oh * OW + ow          # (Cout,)
            for kh in range(k):
                h = oh * stride - padding + kh
                if h < 0 or h >= H:
                    continue
                for kw in range(k):
                    ww = ow * stride - padding + kw
                    if ww < 0 or ww >= W:
                        continue
                    rows = ci_idx * (H * W) + h * W + ww       # (Cin,)
                    dense[np.ix_(rows, cols)] = w[:, :, kh, kw].T
    bias = np.repeat(b, OH * OW)                               # [co, oh, ow] order
    return dense, bias, (OH, OW)


# --------------------------- fused Pallas kernel -----------------------------

def _mm_bias_relu(x, w, b):
    # bf16 MXU inputs, f32 accumulation, f32 bias+ReLU epilogue (v5e-friendly).
    acc = jnp.dot(x.astype(w.dtype), w, preferred_element_type=jnp.float32)
    return jnp.maximum(acc + b, 0.0)


def _encoder3_kernel(x_ref, w1_ref, b1_ref, w2_ref, b2_ref, wl_ref, bl_ref, o_ref):
    # conv1 + ReLU, conv2 + ReLU, linear + ReLU -- all in VMEM, one launch.
    h = _mm_bias_relu(x_ref[...], w1_ref[...], b1_ref[...])
    h = _mm_bias_relu(h, w2_ref[...], b2_ref[...])
    h = _mm_bias_relu(h, wl_ref[...], bl_ref[...])
    o_ref[...] = h.astype(o_ref.dtype)


def _encoder2_kernel(x_ref, w1_ref, b1_ref, w2_ref, b2_ref, o_ref):
    h = _mm_bias_relu(x_ref[...], w1_ref[...], b1_ref[...])
    h = _mm_bias_relu(h, w2_ref[...], b2_ref[...])
    o_ref[...] = h.astype(o_ref.dtype)


# ------------------------------ Encoder module -------------------------------

class EncoderPallas:
    STRIDES = [3, 3]
    KERNELS = [5, 5]
    PADDINGS = [3, 3]
    COLOR_CHANNELS = [8, 4]

    _M_TILE = 512   # max batch-row tile (grid axis is "parallel"); weights stay resident

    def __init__(self, color_channel, input_shape, n_latent_features=None, seed=0):
        self.color_channel = color_channel
        self.n_latent_features = n_latent_features

        h, w = input_shape
        c0, c1 = self.COLOR_CHANNELS
        kk, ss, pp = self.KERNELS, self.STRIDES, self.PADDINGS

        key = jax.random.PRNGKey(seed)
        k1, k2, k3, k4, k5, k6 = jax.random.split(key, 6)
        # Deterministic synthetic parameters (PyTorch weight layouts).
        self.w1 = 0.1 * jax.random.normal(k1, (c0, color_channel, kk[0], kk[0]), jnp.float32)
        self.b1 = 0.1 * jax.random.normal(k2, (c0,), jnp.float32)
        self.w2 = 0.1 * jax.random.normal(k3, (c1, c0, kk[1], kk[1]), jnp.float32)
        self.b2 = 0.1 * jax.random.normal(k4, (c1,), jnp.float32)

        # One-time lowering of the conv stack to matmul layout.
        w1d, b1d, (oh1, ow1) = _conv_to_dense(self.w1, self.b1, (h, w), ss[0], pp[0])
        w2d, b2d, (oh2, ow2) = _conv_to_dense(self.w2, self.b2, (oh1, ow1), ss[1], pp[1])

        self.conv1_output_size = (oh1, ow1)
        self.conv2_output_size = (oh2, ow2)
        self.output_size = (oh2, ow2)
        self.n_neurons_in_middle_layer = oh2 * ow2 * c1

        k_in = w1d.shape[0]                        # color_channel * H * W
        n1 = w1d.shape[1]                          # c0 * oh1 * ow1
        n2 = w2d.shape[1]                          # c1 * oh2 * ow2 == n_mid
        n1p = _round_up(n1, 128)                   # lane-dense intermediate
        n2p = _round_up(n2, 128)                   # lane-dense intermediate / output

        w1p = np.zeros((k_in, n1p), np.float32); w1p[:, :n1] = w1d
        b1p = np.zeros((1, n1p), np.float32);    b1p[0, :n1] = b1d
        w2p = np.zeros((n1p, n2p), np.float32);  w2p[:n1, :n2] = w2d
        b2p = np.zeros((1, n2p), np.float32);    b2p[0, :n2] = b2d

        self._k_in = k_in
        # Weights in bf16 (halve DMA, 2x MXU); biases stay f32 for the epilogue.
        self.w1d = jnp.asarray(w1p, dtype=jnp.bfloat16)
        self.b1d = jnp.asarray(b1p)
        self.w2d = jnp.asarray(w2p, dtype=jnp.bfloat16)
        self.b2d = jnp.asarray(b2p)

        resident_bytes = (w1p.size + w2p.size) * 2 + (b1p.size + b2p.size) * 4

        if n_latent_features:
            n_mid = self.n_neurons_in_middle_layer
            nlp = _round_up(n_latent_features, 128)   # lane-dense output slab
            self.wl = 0.1 * jax.random.normal(k5, (n_latent_features, n_mid), jnp.float32)
            self.bl = 0.1 * jax.random.normal(k6, (n_latent_features,), jnp.float32)
            wlp = np.zeros((n2p, nlp), np.float32)
            wlp[:n_mid, :n_latent_features] = np.asarray(self.wl).T
            blp = np.zeros((1, nlp), np.float32)
            blp[0, :n_latent_features] = np.asarray(self.bl, np.float32)
            self.wld = jnp.asarray(wlp, dtype=jnp.bfloat16)
            self.bld = jnp.asarray(blp)
            self._n_out = n_latent_features
            self._n_out_pad = nlp
            resident_bytes += wlp.size * 2 + blp.size * 4
        else:
            self._n_out = self.n_neurons_in_middle_layer
            self._n_out_pad = n2p

        # Guard: resident weights must comfortably fit the default scoped VMEM
        # (even on v7x's 64 MiB chip VMEM, leaving room for x/out double buffers).
        # TODO(synk): for larger images, K-tile the conv1 matmul (extra
        # "arbitrary" grid axis + f32 VMEM accumulator) / use im2col instead.
        assert resident_bytes < 24 * (1 << 20), (
            "dense conv lowering too large for resident VMEM: %d bytes" % resident_bytes)

    @functools.partial(jax.jit, static_argnums=0)
    def forward(self, x_nchw):
        m = x_nchw.shape[0]
        x2d = x_nchw.reshape(m, self._k_in).astype(jnp.float32)   # free reshape

        # Sublane-aligned row tile; for m >= 16 force >= 2 grid steps so v7x's
        # two TensorCores both get work ("parallel" axis), capped at _M_TILE.
        if m >= 16:
            tm = min(self._M_TILE, _round_up(pl.cdiv(m, 2), 8))
        else:
            tm = _round_up(m, 8)
        m_pad = _round_up(m, tm)
        if m_pad != m:
            x2d = jnp.pad(x2d, ((0, m_pad - m), (0, 0)))
        grid = (m_pad // tm,)

        # NOTE: weight/bias blocks have constant index_maps; single-buffering
        # them (pipeline_mode) only matters once W1 grows -- not needed here.
        full = lambda arr: pl.BlockSpec(arr.shape, lambda i: (0, 0))
        args = [x2d, self.w1d, self.b1d, self.w2d, self.b2d]
        in_specs = [pl.BlockSpec((tm, self._k_in), lambda i: (i, 0)),
                    full(self.w1d), full(self.b1d),
                    full(self.w2d), full(self.b2d)]
        if self.n_latent_features:
            kernel = _encoder3_kernel
            args += [self.wld, self.bld]
            in_specs += [full(self.wld), full(self.bld)]
        else:
            kernel = _encoder2_kernel

        out = pl.pallas_call(
            kernel,
            out_shape=jax.ShapeDtypeStruct((m_pad, self._n_out_pad), jnp.float32),
            grid=grid,
            in_specs=in_specs,
            out_specs=pl.BlockSpec((tm, self._n_out_pad), lambda i: (i, 0)),
            compiler_params=pltpu.CompilerParams(
                dimension_semantics=("parallel",)),
        )(*args)
        # Strip the sublane/lane padding outside the kernel (cheap XLA slice).
        return out[:m, :self._n_out]


# ------------------------------ reference check ------------------------------

def _reference_forward(enc, x):
    """Pure-JAX (XLA, f32) reference of the same math for a correctness check."""
    def conv(x, w, b, stride, padding):
        y = jax.lax.conv_general_dilated(
            x, w, window_strides=(stride, stride),
            padding=[(padding, padding), (padding, padding)],
            dimension_numbers=("NCHW", "OIHW", "NCHW"))
        return jnp.maximum(y + b[None, :, None, None], 0.0)

    out = conv(x, enc.w1, enc.b1, enc.STRIDES[0], enc.PADDINGS[0])
    out = conv(out, enc.w2, enc.b2, enc.STRIDES[1], enc.PADDINGS[1])
    out = out.reshape(-1, enc.n_neurons_in_middle_layer)
    if enc.n_latent_features:
        out = jnp.maximum(out @ enc.wl.T + enc.bl, 0.0)
    return out


if __name__ == "__main__":
    batch, cin, h, w = 2, 3, 16, 16
    n_latent = 32

    key = jax.random.PRNGKey(0)
    x = jax.random.normal(key, (batch, cin, h, w), jnp.float32)   # NCHW, like PyTorch

    enc = EncoderPallas(color_channel=cin, input_shape=(h, w),
                        n_latent_features=n_latent, seed=0)

    out = jax.block_until_ready(enc.forward(x))
    assert out.shape == (batch, n_latent), out.shape

    ref = jax.block_until_ready(_reference_forward(enc, x))
    # Tolerance loosened vs the all-f32 version: MXU inputs are bf16-rounded
    # (accumulation and epilogue remain f32).
    assert jnp.allclose(out, ref, atol=5e-2, rtol=5e-2), \
        float(jnp.max(jnp.abs(out - ref)))

    print("KERNEL_OK")
</pallas_src>

<mosaic_0001>
module attributes {stable_mosaic.version = 11 : i64} {
  func.func @_encoder3_kernel(%arg0: i32, %arg1: memref<8x768xf32, #tpu.memory_space<vmem>>, %arg2: memref<768x384xbf16, #tpu.memory_space<vmem>>, %arg3: memref<1x384xf32, #tpu.memory_space<vmem>>, %arg4: memref<384x128xbf16, #tpu.memory_space<vmem>>, %arg5: memref<1x128xf32, #tpu.memory_space<vmem>>, %arg6: memref<128x128xbf16, #tpu.memory_space<vmem>>, %arg7: memref<1x128xf32, #tpu.memory_space<vmem>>, %arg8: memref<8x128xf32, #tpu.memory_space<vmem>>) attributes {dimension_semantics = [#tpu.dimension_semantics<parallel>], iteration_bounds = array<i64: 1>, scalar_prefetch = 0 : i64, scratch_operands = 0 : i64, tpu.core_type = #tpu.core_type<tc>, window_params = [{transform_indices = @transform_0, window_bounds = array<i64: 8, 768>}, {pipeline_mode = #tpu.pipeline_mode<synchronous>, transform_indices = @transform_1, window_bounds = array<i64: 768, 384>}, {pipeline_mode = #tpu.pipeline_mode<synchronous>, transform_indices = @transform_2, window_bounds = array<i64: 1, 384>}, {pipeline_mode = #tpu.pipeline_mode<synchronous>, transform_indices = @transform_3, window_bounds = array<i64: 384, 128>}, {pipeline_mode = #tpu.pipeline_mode<synchronous>, transform_indices = @transform_4, window_bounds = array<i64: 1, 128>}, {pipeline_mode = #tpu.pipeline_mode<synchronous>, transform_indices = @transform_5, window_bounds = array<i64: 128, 128>}, {pipeline_mode = #tpu.pipeline_mode<synchronous>, transform_indices = @transform_6, window_bounds = array<i64: 1, 128>}, {transform_indices = @transform_7, window_bounds = array<i64: 8, 128>}]} {
    %c0 = arith.constant 0 : index
    %c0_0 = arith.constant 0 : index
    %0 = vector.load %arg1[%c0, %c0_0] : memref<8x768xf32, #tpu.memory_space<vmem>>, vector<8x768xf32>
    %c0_1 = arith.constant 0 : index
    %c0_2 = arith.constant 0 : index
    %1 = vector.load %arg2[%c0_1, %c0_2] : memref<768x384xbf16, #tpu.memory_space<vmem>>, vector<768x384xbf16>
    %c0_3 = arith.constant 0 : index
    %c0_4 = arith.constant 0 : index
    %2 = vector.load %arg3[%c0_3, %c0_4] : memref<1x384xf32, #tpu.memory_space<vmem>>, vector<1x384xf32>
    %3 = arith.truncf %0 : vector<8x768xf32> to vector<8x768xbf16>
    %cst = arith.constant dense<0.000000e+00> : vector<8x384xf32>
    %4 = tpu.matmul %3, %1, %cst {dimension_numbers = #tpu.dot_dimension_numbers<[1], [0], [0], [1], [0, 0, 1, 1], [], []>} : vector<8x768xbf16>, vector<768x384xbf16>, vector<8x384xf32> -> vector<8x384xf32>
    %5 = vector.broadcast %2 : vector<1x384xf32> to vector<8x384xf32>
    %6 = arith.addf %4, %5 : vector<8x384xf32>
    %cst_5 = arith.constant 0.000000e+00 : f32
    %7 = vector.broadcast %cst_5 : f32 to vector<8x384xf32>
    %8 = arith.maximumf %6, %7 : vector<8x384xf32>
    %c0_6 = arith.constant 0 : index
    %c0_7 = arith.constant 0 : index
    %9 = vector.load %arg4[%c0_6, %c0_7] : memref<384x128xbf16, #tpu.memory_space<vmem>>, vector<384x128xbf16>
    %c0_8 = arith.constant 0 : index
    %c0_9 = arith.constant 0 : index
    %10 = vector.load %arg5[%c0_8, %c0_9] : memref<1x128xf32, #tpu.memory_space<vmem>>, vector<1x128xf32>
    %11 = arith.truncf %8 : vector<8x384xf32> to vector<8x384xbf16>
    %cst_10 = arith.constant dense<0.000000e+00> : vector<8x128xf32>
    %12 = tpu.matmul %11, %9, %cst_10 {dimension_numbers = #tpu.dot_dimension_numbers<[1], [0], [0], [1], [0, 0, 1, 1], [], []>} : vector<8x384xbf16>, vector<384x128xbf16>, vector<8x128xf32> -> vector<8x128xf32>
    %13 = vector.broadcast %10 : vector<1x128xf32> to vector<8x128xf32>
    %14 = arith.addf %12, %13 : vector<8x128xf32>
    %cst_11 = arith.constant 0.000000e+00 : f32
    %15 = vector.broadcast %cst_11 : f32 to vector<8x128xf32>
    %16 = arith.maximumf %14, %15 : vector<8x128xf32>
    %c0_12 = arith.constant 0 : index
    %c0_13 = arith.constant 0 : index
    %17 = vector.load %arg6[%c0_12, %c0_13] : memref<128x128xbf16, #tpu.memory_space<vmem>>, vector<128x128xbf16>
    %c0_14 = arith.constant 0 : index
    %c0_15 = arith.constant 0 : index
    %18 = vector.load %arg7[%c0_14, %c0_15] : memref<1x128xf32, #tpu.memory_space<vmem>>, vector<1x128xf32>
    %19 = arith.truncf %16 : vector<8x128xf32> to vector<8x128xbf16>
    %cst_16 = arith.constant dense<0.000000e+00> : vector<8x128xf32>
    %20 = tpu.matmul %19, %17, %cst_16 {dimension_numbers = #tpu.dot_dimension_numbers<[1], [0], [0], [1], [0, 0, 1, 1], [], []>} : vector<8x128xbf16>, vector<128x128xbf16>, vector<8x128xf32> -> vector<8x128xf32>
    %21 = vector.broadcast %18 : vector<1x128xf32> to vector<8x128xf32>
    %22 = arith.addf %20, %21 : vector<8x128xf32>
    %cst_17 = arith.constant 0.000000e+00 : f32
    %23 = vector.broadcast %cst_17 : f32 to vector<8x128xf32>
    %24 = arith.maximumf %22, %23 : vector<8x128xf32>
    %c0_18 = arith.constant 0 : index
    %c0_19 = arith.constant 0 : index
    %25 = vector.load %arg8[%c0_18, %c0_19] : memref<8x128xf32, #tpu.memory_space<vmem>>, vector<8x128xf32>
    tpu.vector_store %arg8[%c0_18, %c0_19], %24 {strides = array<i32>} : memref<8x128xf32, #tpu.memory_space<vmem>>, vector<8x128xf32>,
    return
  }
  func.func @transform_0(%arg0: i32) -> (i32, i32) {
    %c0_i32 = arith.constant 0 : i32
    %c0_i32_0 = arith.constant 0 : i32
    return %arg0, %c0_i32 : i32, i32
  }
  func.func @transform_1(%arg0: i32) -> (i32, i32) {
    %c0_i32 = arith.constant 0 : i32
    %c0_i32_0 = arith.constant 0 : i32
    %c0_i32_1 = arith.constant 0 : i32
    return %c0_i32, %c0_i32_0 : i32, i32
  }
  func.func @transform_2(%arg0: i32) -> (i32, i32) {
    %c0_i32 = arith.constant 0 : i32
    %c0_i32_0 = arith.constant 0 : i32
    %c0_i32_1 = arith.constant 0 : i32
    return %c0_i32, %c0_i32_0 : i32, i32
  }
  func.func @transform_3(%arg0: i32) -> (i32, i32) {
    %c0_i32 = arith.constant 0 : i32
    %c0_i32_0 = arith.constant 0 : i32
    %c0_i32_1 = arith.constant 0 : i32
    return %c0_i32, %c0_i32_0 : i32, i32
  }
  func.func @transform_4(%arg0: i32) -> (i32, i32) {
    %c0_i32 = arith.constant 0 : i32
    %c0_i32_0 = arith.constant 0 : i32
    %c0_i32_1 = arith.constant 0 : i32
    return %c0_i32, %c0_i32_0 : i32, i32
  }
  func.func @transform_5(%arg0: i32) -> (i32, i32) {
    %c0_i32 = arith.constant 0 : i32
    %c0_i32_0 = arith.constant 0 : i32
    %c0_i32_1 = arith.constant 0 : i32
    return %c0_i32, %c0_i32_0 : i32, i32
  }
  func.func @transform_6(%arg0: i32) -> (i32, i32) {
    %c0_i32 = arith.constant 0 : i32
    %c0_i32_0 = arith.constant 0 : i32
    %c0_i32_1 = arith.constant 0 : i32
    return %c0_i32, %c0_i32_0 : i32, i32
  }
  func.func @transform_7(%arg0: i32) -> (i32, i32) {
    %c0_i32 = arith.constant 0 : i32
    %c0_i32_0 = arith.constant 0 : i32
    return %arg0, %c0_i32 : i32, i32
  }
}

</mosaic_0001>

<llo_original>
// kernel: forward.1
$region0: #{forward.1}
  #allocation0 [shape = 'u32[]', space=smem, size = 0x4, offset = 0x4, fixed_abs, tag = 'smem constant byte address 0x4 - core index']
  #allocation1 [shape = 'u32[144,128]{1,0:T(1,128)}', space=vmem, size = 0x12000, scoped, tag = 'internal scratch']
  %s0 = inlined_call_operand.vmem [shape: f32[8,768], index: 0, kind: input, shape index: {}]
  %s1 = inlined_call_operand.hbm [shape: bf16[768,384], index: 1, kind: input, shape index: {}]
  %s2 = inlined_call_operand.vmem [shape: f32[1,384], index: 2, kind: input, shape index: {}]
  %s3 = inlined_call_operand.hbm [shape: bf16[384,128], index: 3, kind: input, shape index: {}]
  %s4 = inlined_call_operand.vmem [shape: f32[1,128], index: 4, kind: input, shape index: {}]
  %s5 = inlined_call_operand.vmem [shape: bf16[128,128], index: 5, kind: input, shape index: {}]
  %s6 = inlined_call_operand.vmem [shape: f32[1,128], index: 6, kind: input, shape index: {}]
  %s7 = inlined_call_operand.vmem [shape: f32[8,128], index: 7, kind: output, shape index: {}]
  %s8 = sld [smem:[#allocation0]]
  $region46: #{forward.1} parent=0
    _
  %s10 = ssub.s32 1, %s8
  %s11 = scalar_select 0, %s10, %s8
  $region1: #{forward.1} parent=0
    #allocation2 [shape = 'u8[589824]{0}', space=vmem, size = 0x90000, scoped, tag = 'input window, operand 1, single buffered']
    #allocation3 [shape = 's32[1]{0}', space=sflag, size = 0x4, scoped, tag = 'scoped memory for forward.1']
    #allocation4 [shape = 'u8[98304]{0}', space=vmem, size = 0x18000, scoped, tag = 'input window, operand 3, single buffered']
    #allocation5 [shape = 's32[1]{0}', space=sflag, size = 0x4, scoped, tag = 'scoped memory for forward.1']
    %12 = vsyncpa [#allocation3], 0
    %13 = vsyncpa [#allocation5], 0
    // Predicated region
    $region2: #{forward.1} parent=1 // pred_check
      _
    $region3: #{forward.1} parent=1 // pred_check_branch
      %15 = sbr.rel (0) target = $region5
    $region4: #{forward.1} parent=1 // pred_region
      _
    $region5: #{forward.1} parent=1 // pred_fallthru
      _
    // Predicated region
    $region6: #{forward.1} parent=1 // pred_check
      _
    $region7: #{forward.1} parent=1 // pred_check_branch
      %17 = sbr.rel (0) target = $region9
    $region8: #{forward.1} parent=1 // pred_region
      %s19 = ssub.s32 18432, 18432
      %20 = vsyncadd [#allocation3], %s19
      %s21 = sshll.u32 [#allocation2], 4
      %s22 = int_to_ptr.vmem [resolvable:$true] %s21
      %27 = dma.hbm_to_vmem [thread:$0]  %s1, 18432, %s22, [#allocation3], 192, 192, 12
    $region9: #{forward.1} parent=1 // pred_fallthru
      _
    // Predicated region
    $region10: #{forward.1} parent=1 // pred_check
      _
    $region11: #{forward.1} parent=1 // pred_check_branch
      %29 = sbr.rel (0) target = $region13
    $region12: #{forward.1} parent=1 // pred_region
      _
    $region13: #{forward.1} parent=1 // pred_fallthru
      _
    // Predicated region
    $region14: #{forward.1} parent=1 // pred_check
      _
    $region15: #{forward.1} parent=1 // pred_check_branch
      %31 = sbr.rel (0) target = $region17
    $region16: #{forward.1} parent=1 // pred_region
      %s33 = ssub.s32 3072, 3072
      %34 = vsyncadd [#allocation5], %s33
      %s35 = sshll.u32 [#allocation4], 4
      %s36 = int_to_ptr.vmem [resolvable:$true] %s35
      %41 = dma.hbm_to_vmem [thread:$0]  %s3, 3072, %s36, [#allocation5], 64, 64, 4
    $region17: #{forward.1} parent=1 // pred_fallthru
      _
    // Predicated region
    $region18: #{forward.1} parent=1 // pred_check
      _
    $region19: #{forward.1} parent=1 // pred_check_branch
      %43 = sbr.rel (0) target = $region21
    $region20: #{forward.1} parent=1 // pred_region
      _
    $region21: #{forward.1} parent=1 // pred_fallthru
      _
    // Predicated region
    $region22: #{forward.1} parent=1 // pred_check
      _
    $region23: #{forward.1} parent=1 // pred_check_branch
      %45 = sbr.rel (0) target = $region25
    $region24: #{forward.1} parent=1 // pred_region
      _
    $region25: #{forward.1} parent=1 // pred_fallthru
      _
    // Predicated region
    $region26: #{forward.1} parent=1 // pred_check
      _
    $region27: #{forward.1} parent=1 // pred_check_branch
      %47 = sbr.rel (0) target = $region29
    $region28: #{forward.1} parent=1 // pred_region
      _
    $region29: #{forward.1} parent=1 // pred_fallthru
      _
    // Predicated region
    $region30: #{forward.1} parent=1 // pred_check
      _
    $region31: #{forward.1} parent=1 // pred_check_branch
      %49 = sbr.rel (0) target = $region33
    $region32: #{forward.1} parent=1 // pred_region
      %50 = dma.done [#allocation3], 18432
    $region33: #{forward.1} parent=1 // pred_fallthru
      _
    // Predicated region
    $region34: #{forward.1} parent=1 // pred_check
      _
    $region35: #{forward.1} parent=1 // pred_check_branch
      %52 = sbr.rel (0) target = $region37
    $region36: #{forward.1} parent=1 // pred_region
      %53 = dma.done [#allocation5], 3072
    $region37: #{forward.1} parent=1 // pred_fallthru
      _
    %v55 = vld [vmem:[%s0] sm:$0xff]
    %v56 = vld [vmem:[%s0 + $0x8] sm:$0xff]
    %v57 = vld [vmem:[%s0 + $0x10] sm:$0xff]
    %v58 = vld [vmem:[%s0 + $0x18] sm:$0xff]
    %v59 = vld [vmem:[%s0 + $0x20] sm:$0xff]
    %v60 = vld [vmem:[%s0 + $0x28] sm:$0xff]
    %v61 = vld [vmem:[#allocation2] sm:$0xff]
    %v62 = vld [vmem:[#allocation2 + $0x8] sm:$0xf]
    %v63 = vld [vmem:[#allocation2 + $0xc] sm:$0xff]
    %v64 = vld [vmem:[#allocation2 + $0x14] sm:$0xf]
    %v65 = vld [vmem:[#allocation2 + $0x18] sm:$0xff]
    %v66 = vld [vmem:[#allocation2 + $0x20] sm:$0xf]
    %v67 = vld [vmem:[#allocation2 + $0x24] sm:$0xff]
    %v68 = vld [vmem:[#allocation2 + $0x2c] sm:$0xf]
    %v69 = vld [vmem:[#allocation2 + $0x30] sm:$0xff]
    %v70 = vld [vmem:[#allocation2 + $0x38] sm:$0xf]
    %v71 = vld [vmem:[#allocation2 + $0x3c] sm:$0xff]
    %v72 = vld [vmem:[#allocation2 + $0x44] sm:$0xf]
    %v73 = vld [vmem:[#allocation2 + $0x48] sm:$0xff]
    %v74 = vld [vmem:[#allocation2 + $0x50] sm:$0xf]
    %v75 = vld [vmem:[#allocation2 + $0x54] sm:$0xff]
    %v76 = vld [vmem:[#allocation2 + $0x5c] sm:$0xf]
    %v77 = vld [vmem:[#allocation2 + $0x60] sm:$0xff]
    %v78 = vld [vmem:[#allocation2 + $0x68] sm:$0xf]
    %v79 = vld [vmem:[#allocation2 + $0x6c] sm:$0xff]
    %v80 = vld [vmem:[#allocation2 + $0x74] sm:$0xf]
    %v81 = vld [vmem:[#allocation2 + $0x78] sm:$0xff]
    %v82 = vld [vmem:[#allocation2 + $0x80] sm:$0xf]
    %v83 = vld [vmem:[#allocation2 + $0x84] sm:$0xff]
    %v84 = vld [vmem:[#allocation2 + $0x8c] sm:$0xf]
    %v85 = vld [vmem:[#allocation2 + $0x90] sm:$0xff]
    %v86 = vld [vmem:[#allocation2 + $0x98] sm:$0xf]
    %v87 = vld [vmem:[#allocation2 + $0x9c] sm:$0xff]
    %v88 = vld [vmem:[#allocation2 + $0xa4] sm:$0xf]
    %v89 = vld [vmem:[#allocation2 + $0xa8] sm:$0xff]
    %v90 = vld [vmem:[#allocation2 + $0xb0] sm:$0xf]
    %v91 = vld [vmem:[#allocation2 + $0xb4] sm:$0xff]
    %v92 = vld [vmem:[#allocation2 + $0xbc] sm:$0xf]
    %v93 = vld [vmem:[#allocation2 + $0xc0] sm:$0xff]
    %v94 = vld [vmem:[#allocation2 + $0xc8] sm:$0xf]
    %v95 = vld [vmem:[#allocation2 + $0xcc] sm:$0xff]
    %v96 = vld [vmem:[#allocation2 + $0xd4] sm:$0xf]
    %v97 = vld [vmem:[#allocation2 + $0xd8] sm:$0xff]
    %v98 = vld [vmem:[#allocation2 + $0xe0] sm:$0xf]
    %v99 = vld [vmem:[#allocation2 + $0xe4] sm:$0xff]
    %v100 = vld [vmem:[#allocation2 + $0xec] sm:$0xf]
    %v101 = vld [vmem:[#allocation2 + $0xf0] sm:$0xff]
    %v102 = vld [vmem:[#allocation2 + $0xf8] sm:$0xf]
    %v103 = vld [vmem:[#allocation2 + $0xfc] sm:$0xff]
    %v104 = vld [vmem:[#allocation2 + $0x104] sm:$0xf]
    %v105 = vld [vmem:[#allocation2 + $0x108] sm:$0xff]
    %v106 = vld [vmem:[#allocation2 + $0x110] sm:$0xf]
    %v107 = vld [vmem:[#allocation2 + $0x114] sm:$0xff]
    %v108 = vld [vmem:[#allocation2 + $0x11c] sm:$0xf]
    %v109 = vld [vmem:[#allocation2 + $0x120] sm:$0xff]
    %v110 = vld [vmem:[#allocation2 + $0x128] sm:$0xf]
    %v111 = vld [vmem:[#allocation2 + $0x12c] sm:$0xff]
    %v112 = vld [vmem:[#allocation2 + $0x134] sm:$0xf]
    %v113 = vld [vmem:[#allocation2 + $0x138] sm:$0xff]
    %v114 = vld [vmem:[#allocation2 + $0x140] sm:$0xf]
    %v115 = vld [vmem:[#allocation2 + $0x144] sm:$0xff]
    %v116 = vld [vmem:[#allocation2 + $0x14c] sm:$0xf]
    %v117 = vld [vmem:[#allocation2 + $0x150] sm:$0xff]
    %v118 = vld [vmem:[#allocation2 + $0x158] sm:$0xf]
    %v119 = vld [vmem:[#allocation2 + $0x15c] sm:$0xff]
    %v120 = vld [vmem:[#allocation2 + $0x164] sm:$0xf]
    %v121 = vld [vmem:[#allocation2 + $0x168] sm:$0xff]
    %v122 = vld [vmem:[#allocation2 + $0x170] sm:$0xf]
    %v123 = vld [vmem:[#allocation2 + $0x174] sm:$0xff]
    %v124 = vld [vmem:[#allocation2 + $0x17c] sm:$0xf]
    %v125 = vld [vmem:[#allocation2 + $0x180] sm:$0xff]
    %v126 = vld [vmem:[#allocation2 + $0x188] sm:$0xf]
    %v127 = vld [vmem:[#allocation2 + $0x18c] sm:$0xff]
    %v128 = vld [vmem:[#allocation2 + $0x194] sm:$0xf]
    %v129 = vld [vmem:[#allocation2 + $0x198] sm:$0xff]
    %v130 = vld [vmem:[#allocation2 + $0x1a0] sm:$0xf]
    %v131 = vld [vmem:[#allocation2 + $0x1a4] sm:$0xff]
    %v132 = vld [vmem:[#allocation2 + $0x1ac] sm:$0xf]
    %v133 = vld [vmem:[#allocation2 + $0x1b0] sm:$0xff]
    %v134 = vld [vmem:[#allocation2 + $0x1b8] sm:$0xf]
    %v135 = vld [vmem:[#allocation2 + $0x1bc] sm:$0xff]
    %v136 = vld [vmem:[#allocation2 + $0x1c4] sm:$0xf]
    %v137 = vld [vmem:[#allocation2 + $0x1c8] sm:$0xff]
    %v138 = vld [vmem:[#allocation2 + $0x1d0] sm:$0xf]
    %v139 = vld [vmem:[#allocation2 + $0x1d4] sm:$0xff]
    %v140 = vld [vmem:[#allocation2 + $0x1dc] sm:$0xf]
    %v141 = vld [vmem:[#allocation2 + $0x1e0] sm:$0xff]
    %v142 = vld [vmem:[#allocation2 + $0x1e8] sm:$0xf]
    %v143 = vld [vmem:[#allocation2 + $0x1ec] sm:$0xff]
    %v144 = vld [vmem:[#allocation2 + $0x1f4] sm:$0xf]
    %v145 = vld [vmem:[#allocation2 + $0x1f8] sm:$0xff]
    %v146 = vld [vmem:[#allocation2 + $0x200] sm:$0xf]
    %v147 = vld [vmem:[#allocation2 + $0x204] sm:$0xff]
    %v148 = vld [vmem:[#allocation2 + $0x20c] sm:$0xf]
    %v149 = vld [vmem:[#allocation2 + $0x210] sm:$0xff]
    %v150 = vld [vmem:[#allocation2 + $0x218] sm:$0xf]
    %v151 = vld [vmem:[#allocation2 + $0x21c] sm:$0xff]
    %v152 = vld [vmem:[#allocation2 + $0x224] sm:$0xf]
    %v153 = vld [vmem:[#allocation2 + $0x228] sm:$0xff]
    %v154 = vld [vmem:[#allocation2 + $0x230] sm:$0xf]
    %v155 = vld [vmem:[#allocation2 + $0x234] sm:$0xff]
    %v156 = vld [vmem:[#allocation2 + $0x23c] sm:$0xf]
    %v157 = vld [vmem:[#allocation2 + $0x240] sm:$0xff]
    %v158 = vld [vmem:[#allocation2 + $0x248] sm:$0xf]
    %v159 = vld [vmem:[#allocation2 + $0x24c] sm:$0xff]
    %v160 = vld [vmem:[#allocation2 + $0x254] sm:$0xf]
    %v161 = vld [vmem:[#allocation2 + $0x258] sm:$0xff]
    %v162 = vld [vmem:[#allocation2 + $0x260] sm:$0xf]
    %v163 = vld [vmem:[#allocation2 + $0x264] sm:$0xff]
    %v164 = vld [vmem:[#allocation2 + $0x26c] sm:$0xf]
    %v165 = vld [vmem:[#allocation2 + $0x270] sm:$0xff]
    %v166 = vld [vmem:[#allocation2 + $0x278] sm:$0xf]
    %v167 = vld [vmem:[#allocation2 + $0x27c] sm:$0xff]
    %v168 = vld [vmem:[#allocation2 + $0x284] sm:$0xf]
    %v169 = vld [vmem:[#allocation2 + $0x288] sm:$0xff]
    %v170 = vld [vmem:[#allocation2 + $0x290] sm:$0xf]
    %v171 = vld [vmem:[#allocation2 + $0x294] sm:$0xff]
    %v172 = vld [vmem:[#allocation2 + $0x29c] sm:$0xf]
    %v173 = vld [vmem:[#allocation2 + $0x2a0] sm:$0xff]
    %v174 = vld [vmem:[#allocation2 + $0x2a8] sm:$0xf]
    %v175 = vld [vmem:[#allocation2 + $0x2ac] sm:$0xff]
    %v176 = vld [vmem:[#allocation2 + $0x2b4] sm:$0xf]
    %v177 = vld [vmem:[#allocation2 + $0x2b8] sm:$0xff]
    %v178 = vld [vmem:[#allocation2 + $0x2c0] sm:$0xf]
    %v179 = vld [vmem:[#allocation2 + $0x2c4] sm:$0xff]
    %v180 = vld [vmem:[#allocation2 + $0x2cc] sm:$0xf]
    %v181 = vld [vmem:[#allocation2 + $0x2d0] sm:$0xff]
    %v182 = vld [vmem:[#allocation2 + $0x2d8] sm:$0xf]
    %v183 = vld [vmem:[#allocation2 + $0x2dc] sm:$0xff]
    %v184 = vld [vmem:[#allocation2 + $0x2e4] sm:$0xf]
    %v185 = vld [vmem:[#allocation2 + $0x2e8] sm:$0xff]
    %v186 = vld [vmem:[#allocation2 + $0x2f0] sm:$0xf]
    %v187 = vld [vmem:[#allocation2 + $0x2f4] sm:$0xff]
    %v188 = vld [vmem:[#allocation2 + $0x2fc] sm:$0xf]
    %v189 = vld [vmem:[#allocation2 + $0x300] sm:$0xff]
    %v190 = vld [vmem:[#allocation2 + $0x308] sm:$0xf]
    %v191 = vld [vmem:[#allocation2 + $0x30c] sm:$0xff]
    %v192 = vld [vmem:[#allocation2 + $0x314] sm:$0xf]
    %v193 = vld [vmem:[#allocation2 + $0x318] sm:$0xff]
    %v194 = vld [vmem:[#allocation2 + $0x320] sm:$0xf]
    %v195 = vld [vmem:[#allocation2 + $0x324] sm:$0xff]
    %v196 = vld [vmem:[#allocation2 + $0x32c] sm:$0xf]
    %v197 = vld [vmem:[#allocation2 + $0x330] sm:$0xff]
    %v198 = vld [vmem:[#allocation2 + $0x338] sm:$0xf]
    %v199 = vld [vmem:[#allocation2 + $0x33c] sm:$0xff]
    %v200 = vld [vmem:[#allocation2 + $0x344] sm:$0xf]
    %v201 = vld [vmem:[#allocation2 + $0x348] sm:$0xff]
    %v202 = vld [vmem:[#allocation2 + $0x350] sm:$0xf]
    %v203 = vld [vmem:[#allocation2 + $0x354] sm:$0xff]
    %v204 = vld [vmem:[#allocation2 + $0x35c] sm:$0xf]
    %v205 = vld [vmem:[#allocation2 + $0x360] sm:$0xff]
    %v206 = vld [vmem:[#allocation2 + $0x368] sm:$0xf]
    %v207 = vld [vmem:[#allocation2 + $0x36c] sm:$0xff]
    %v208 = vld [vmem:[#allocation2 + $0x374] sm:$0xf]
    %v209 = vld [vmem:[#allocation2 + $0x378] sm:$0xff]
    %v210 = vld [vmem:[#allocation2 + $0x380] sm:$0xf]
    %v211 = vld [vmem:[#allocation2 + $0x384] sm:$0xff]
    %v212 = vld [vmem:[#allocation2 + $0x38c] sm:$0xf]
    %v213 = vld [vmem:[#allocation2 + $0x390] sm:$0xff]
    %v214 = vld [vmem:[#allocation2 + $0x398] sm:$0xf]
    %v215 = vld [vmem:[#allocation2 + $0x39c] sm:$0xff]
    %v216 = vld [vmem:[#allocation2 + $0x3a4] sm:$0xf]
    %v217 = vld [vmem:[#allocation2 + $0x3a8] sm:$0xff]
    %v218 = vld [vmem:[#allocation2 + $0x3b0] sm:$0xf]
    %v219 = vld [vmem:[#allocation2 + $0x3b4] sm:$0xff]
    %v220 = vld [vmem:[#allocation2 + $0x3bc] sm:$0xf]
    %v221 = vld [vmem:[#allocation2 + $0x3c0] sm:$0xff]
    %v222 = vld [vmem:[#allocation2 + $0x3c8] sm:$0xf]
    %v223 = vld [vmem:[#allocation2 + $0x3cc] sm:$0xff]
    %v224 = vld [vmem:[#allocation2 + $0x3d4] sm:$0xf]
    %v225 = vld [vmem:[#allocation2 + $0x3d8] sm:$0xff]
    %v226 = vld [vmem:[#allocation2 + $0x3e0] sm:$0xf]
    %v227 = vld [vmem:[#allocation2 + $0x3e4] sm:$0xff]
    %v228 = vld [vmem:[#allocation2 + $0x3ec] sm:$0xf]
    %v229 = vld [vmem:[#allocation2 + $0x3f0] sm:$0xff]
    %v230 = vld [vmem:[#allocation2 + $0x3f8] sm:$0xf]
    %v231 = vld [vmem:[#allocation2 + $0x3fc] sm:$0xff]
    %v232 = vld [vmem:[#allocation2 + $0x404] sm:$0xf]
    %v233 = vld [vmem:[#allocation2 + $0x408] sm:$0xff]
    %v234 = vld [vmem:[#allocation2 + $0x410] sm:$0xf]
    %v235 = vld [vmem:[#allocation2 + $0x414] sm:$0xff]
    %v236 = vld [vmem:[#allocation2 + $0x41c] sm:$0xf]
    %v237 = vld [vmem:[#allocation2 + $0x420] sm:$0xff]
    %v238 = vld [vmem:[#allocation2 + $0x428] sm:$0xf]
    %v239 = vld [vmem:[#allocation2 + $0x42c] sm:$0xff]
    %v240 = vld [vmem:[#allocation2 + $0x434] sm:$0xf]
    %v241 = vld [vmem:[#allocation2 + $0x438] sm:$0xff]
    %v242 = vld [vmem:[#allocation2 + $0x440] sm:$0xf]
    %v243 = vld [vmem:[#allocation2 + $0x444] sm:$0xff]
    %v244 = vld [vmem:[#allocation2 + $0x44c] sm:$0xf]
    %v245 = vld [vmem:[#allocation2 + $0x450] sm:$0xff]
    %v246 = vld [vmem:[#allocation2 + $0x458] sm:$0xf]
    %v247 = vld [vmem:[#allocation2 + $0x45c] sm:$0xff]
    %v248 = vld [vmem:[#allocation2 + $0x464] sm:$0xf]
    %v249 = vld [vmem:[#allocation2 + $0x468] sm:$0xff]
    %v250 = vld [vmem:[#allocation2 + $0x470] sm:$0xf]
    %v251 = vld [vmem:[#allocation2 + $0x474] sm:$0xff]
    %v252 = vld [vmem:[#allocation2 + $0x47c] sm:$0xf]
    %v253 = vld [vmem:[%s2] sm:$0x7]
    %v254 = vpack.c.bf16 %v55, %v55
    %v255 = vpack.c.bf16 %v56, %v56
    %v256 = vpack.c.bf16 %v57, %v57
    %v257 = vpack.c.bf16 %v58, %v58
    %v258 = vpack.c.bf16 %v59, %v59
    %v259 = vpack.c.bf16 %v60, %v60
    %v261 = vlaneseq
    %v262 = vshrl.u32 %v261, 7
    %v263 = vsub.s32 0, %v262
    %v264 = vrot.slane %v253, %v263
    %v265 = vlaneseq
    %v266 = vshrl.u32 %v265, 7
    %v267 = vsub.s32 1, %v266
    %v268 = vrot.slane %v253, %v267
    %v269 = vlaneseq
    %v270 = vshrl.u32 %v269, 7
    %v271 = vsub.s32 2, %v270
    %v272 = vrot.slane %v253, %v271
    %v468 = vunpack.c.l.b16 %v61
    %v469 = vunpack.c.h.b16 %v61
    %v470 = vunpack.c.l.b16 %v62
    %v471 = vunpack.c.l.b16 %v63
    %v472 = vunpack.c.h.b16 %v63
    %v473 = vunpack.c.l.b16 %v64
    %v474 = vunpack.c.l.b16 %v65
    %v475 = vunpack.c.h.b16 %v65
    %v476 = vunpack.c.l.b16 %v66
    %v477 = vunpack.c.l.b16 %v67
    %v478 = vunpack.c.h.b16 %v67
    %v479 = vunpack.c.l.b16 %v68
    %v480 = vunpack.c.l.b16 %v69
    %v481 = vunpack.c.h.b16 %v69
    %v482 = vunpack.c.l.b16 %v70
    %v483 = vunpack.c.l.b16 %v71
    %v484 = vunpack.c.h.b16 %v71
    %v485 = vunpack.c.l.b16 %v72
    %v486 = vunpack.c.l.b16 %v73
    %v487 = vunpack.c.h.b16 %v73
    %v488 = vunpack.c.l.b16 %v74
    %v489 = vunpack.c.l.b16 %v75
    %v490 = vunpack.c.h.b16 %v75
    %v491 = vunpack.c.l.b16 %v76
    %v492 = vunpack.c.l.b16 %v77
    %v493 = vunpack.c.h.b16 %v77
    %v494 = vunpack.c.l.b16 %v78
    %v495 = vunpack.c.l.b16 %v79
    %v496 = vunpack.c.h.b16 %v79
    %v497 = vunpack.c.l.b16 %v80
    %v498 = vunpack.c.l.b16 %v81
    %v499 = vunpack.c.h.b16 %v81
    %v500 = vunpack.c.l.b16 %v82
    %v501 = vunpack.c.l.b16 %v83
    %v502 = vunpack.c.h.b16 %v83
    %v503 = vunpack.c.l.b16 %v84
    %v504 = vunpack.c.l.b16 %v85
    %v505 = vunpack.c.h.b16 %v85
    %v506 = vunpack.c.l.b16 %v86
    %v507 = vunpack.c.l.b16 %v87
    %v508 = vunpack.c.h.b16 %v87
    %v509 = vunpack.c.l.b16 %v88
    %v510 = vunpack.c.l.b16 %v89
    %v511 = vunpack.c.h.b16 %v89
    %v512 = vunpack.c.l.b16 %v90
    %v513 = vunpack.c.l.b16 %v91
    %v514 = vunpack.c.h.b16 %v91
    %v515 = vunpack.c.l.b16 %v92
    %v516 = vunpack.c.l.b16 %v93
    %v517 = vunpack.c.h.b16 %v93
    %v518 = vunpack.c.l.b16 %v94
    %v519 = vunpack.c.l.b16 %v95
    %v520 = vunpack.c.h.b16 %v95
    %v521 = vunpack.c.l.b16 %v96
    %v522 = vunpack.c.l.b16 %v97
    %v523 = vunpack.c.h.b16 %v97
    %v524 = vunpack.c.l.b16 %v98
    %v525 = vunpack.c.l.b16 %v99
    %v526 = vunpack.c.h.b16 %v99
    %v527 = vunpack.c.l.b16 %v100
    %v528 = vunpack.c.l.b16 %v101
    %v529 = vunpack.c.h.b16 %v101
    %v530 = vunpack.c.l.b16 %v102
    %v531 = vunpack.c.l.b16 %v103
    %v532 = vunpack.c.h.b16 %v103
    %v533 = vunpack.c.l.b16 %v104
    %v534 = vunpack.c.l.b16 %v105
    %v535 = vunpack.c.h.b16 %v105
    %v536 = vunpack.c.l.b16 %v106
    %v537 = vunpack.c.l.b16 %v107
    %v538 = vunpack.c.h.b16 %v107
    %v539 = vunpack.c.l.b16 %v108
    %v540 = vunpack.c.l.b16 %v109
    %v541 = vunpack.c.h.b16 %v109
    %v542 = vunpack.c.l.b16 %v110
    %v543 = vunpack.c.l.b16 %v111
    %v544 = vunpack.c.h.b16 %v111
    %v545 = vunpack.c.l.b16 %v112
    %v546 = vunpack.c.l.b16 %v113
    %v547 = vunpack.c.h.b16 %v113
    %v548 = vunpack.c.l.b16 %v114
    %v549 = vunpack.c.l.b16 %v115
    %v550 = vunpack.c.h.b16 %v115
    %v551 = vunpack.c.l.b16 %v116
    %v552 = vunpack.c.l.b16 %v117
    %v553 = vunpack.c.h.b16 %v117
    %v554 = vunpack.c.l.b16 %v118
    %v555 = vunpack.c.l.b16 %v119
    %v556 = vunpack.c.h.b16 %v119
    %v557 = vunpack.c.l.b16 %v120
    %v558 = vunpack.c.l.b16 %v121
    %v559 = vunpack.c.h.b16 %v121
    %v560 = vunpack.c.l.b16 %v122
    %v561 = vunpack.c.l.b16 %v123
    %v562 = vunpack.c.h.b16 %v123
    %v563 = vunpack.c.l.b16 %v124
    %v564 = vunpack.c.l.b16 %v125
    %v565 = vunpack.c.h.b16 %v125
    %v566 = vunpack.c.l.b16 %v126
    %v567 = vunpack.c.l.b16 %v127
    %v568 = vunpack.c.h.b16 %v127
    %v569 = vunpack.c.l.b16 %v128
    %v570 = vunpack.c.l.b16 %v129
    %v571 = vunpack.c.h.b16 %v129
    %v572 = vunpack.c.l.b16 %v130
    %v573 = vunpack.c.l.b16 %v131
    %v574 = vunpack.c.h.b16 %v131
    %v575 = vunpack.c.l.b16 %v132
    %v576 = vunpack.c.l.b16 %v133
    %v577 = vunpack.c.h.b16 %v133
    %v578 = vunpack.c.l.b16 %v134
    %v579 = vunpack.c.l.b16 %v135
    %v580 = vunpack.c.h.b16 %v135
    %v581 = vunpack.c.l.b16 %v136
    %v582 = vunpack.c.l.b16 %v137
    %v583 = vunpack.c.h.b16 %v137
    %v584 = vunpack.c.l.b16 %v138
    %v585 = vunpack.c.l.b16 %v139
    %v586 = vunpack.c.h.b16 %v139
    %v587 = vunpack.c.l.b16 %v140
    %v588 = vunpack.c.l.b16 %v141
    %v589 = vunpack.c.h.b16 %v141
    %v590 = vunpack.c.l.b16 %v142
    %v591 = vunpack.c.l.b16 %v143
    %v592 = vunpack.c.h.b16 %v143
    %v593 = vunpack.c.l.b16 %v144
    %v594 = vunpack.c.l.b16 %v145
    %v595 = vunpack.c.h.b16 %v145
    %v596 = vunpack.c.l.b16 %v146
    %v597 = vunpack.c.l.b16 %v147
    %v598 = vunpack.c.h.b16 %v147
    %v599 = vunpack.c.l.b16 %v148
    %v600 = vunpack.c.l.b16 %v149
    %v601 = vunpack.c.h.b16 %v149
    %v602 = vunpack.c.l.b16 %v150
    %v603 = vunpack.c.l.b16 %v151
    %v604 = vunpack.c.h.b16 %v151
    %v605 = vunpack.c.l.b16 %v152
    %v606 = vunpack.c.l.b16 %v153
    %v607 = vunpack.c.h.b16 %v153
    %v608 = vunpack.c.l.b16 %v154
    %v609 = vunpack.c.l.b16 %v155
    %v610 = vunpack.c.h.b16 %v155
    %v611 = vunpack.c.l.b16 %v156
    %v612 = vunpack.c.l.b16 %v157
    %v613 = vunpack.c.h.b16 %v157
    %v614 = vunpack.c.l.b16 %v158
    %v615 = vunpack.c.l.b16 %v159
    %v616 = vunpack.c.h.b16 %v159
    %v617 = vunpack.c.l.b16 %v160
    %v618 = vunpack.c.l.b16 %v161
    %v619 = vunpack.c.h.b16 %v161
    %v620 = vunpack.c.l.b16 %v162
    %v621 = vunpack.c.l.b16 %v163
    %v622 = vunpack.c.h.b16 %v163
    %v623 = vunpack.c.l.b16 %v164
    %v624 = vunpack.c.l.b16 %v165
    %v625 = vunpack.c.h.b16 %v165
    %v626 = vunpack.c.l.b16 %v166
    %v627 = vunpack.c.l.b16 %v167
    %v628 = vunpack.c.h.b16 %v167
    %v629 = vunpack.c.l.b16 %v168
    %v630 = vunpack.c.l.b16 %v169
    %v631 = vunpack.c.h.b16 %v169
    %v632 = vunpack.c.l.b16 %v170
    %v633 = vunpack.c.l.b16 %v171
    %v634 = vunpack.c.h.b16 %v171
    %v635 = vunpack.c.l.b16 %v172
    %v636 = vunpack.c.l.b16 %v173
    %v637 = vunpack.c.h.b16 %v173
    %v638 = vunpack.c.l.b16 %v174
    %v639 = vunpack.c.l.b16 %v175
    %v640 = vunpack.c.h.b16 %v175
    %v641 = vunpack.c.l.b16 %v176
    %v642 = vunpack.c.l.b16 %v177
    %v643 = vunpack.c.h.b16 %v177
    %v644 = vunpack.c.l.b16 %v178
    %v645 = vunpack.c.l.b16 %v179
    %v646 = vunpack.c.h.b16 %v179
    %v647 = vunpack.c.l.b16 %v180
    %v648 = vunpack.c.l.b16 %v181
    %v649 = vunpack.c.h.b16 %v181
    %v650 = vunpack.c.l.b16 %v182
    %v651 = vunpack.c.l.b16 %v183
    %v652 = vunpack.c.h.b16 %v183
    %v653 = vunpack.c.l.b16 %v184
    %v654 = vunpack.c.l.b16 %v185
    %v655 = vunpack.c.h.b16 %v185
    %v656 = vunpack.c.l.b16 %v186
    %v657 = vunpack.c.l.b16 %v187
    %v658 = vunpack.c.h.b16 %v187
    %v659 = vunpack.c.l.b16 %v188
    %v660 = vunpack.c.l.b16 %v189
    %v661 = vunpack.c.h.b16 %v189
    %v662 = vunpack.c.l.b16 %v190
    %v663 = vunpack.c.l.b16 %v191
    %v664 = vunpack.c.h.b16 %v191
    %v665 = vunpack.c.l.b16 %v192
    %v666 = vunpack.c.l.b16 %v193
    %v667 = vunpack.c.h.b16 %v193
    %v668 = vunpack.c.l.b16 %v194
    %v669 = vunpack.c.l.b16 %v195
    %v670 = vunpack.c.h.b16 %v195
    %v671 = vunpack.c.l.b16 %v196
    %v672 = vunpack.c.l.b16 %v197
    %v673 = vunpack.c.h.b16 %v197
    %v674 = vunpack.c.l.b16 %v198
    %v675 = vunpack.c.l.b16 %v199
    %v676 = vunpack.c.h.b16 %v199
    %v677 = vunpack.c.l.b16 %v200
    %v678 = vunpack.c.l.b16 %v201
    %v679 = vunpack.c.h.b16 %v201
    %v680 = vunpack.c.l.b16 %v202
    %v681 = vunpack.c.l.b16 %v203
    %v682 = vunpack.c.h.b16 %v203
    %v683 = vunpack.c.l.b16 %v204
    %v684 = vunpack.c.l.b16 %v205
    %v685 = vunpack.c.h.b16 %v205
    %v686 = vunpack.c.l.b16 %v206
    %v687 = vunpack.c.l.b16 %v207
    %v688 = vunpack.c.h.b16 %v207
    %v689 = vunpack.c.l.b16 %v208
    %v690 = vunpack.c.l.b16 %v209
    %v691 = vunpack.c.h.b16 %v209
    %v692 = vunpack.c.l.b16 %v210
    %v693 = vunpack.c.l.b16 %v211
    %v694 = vunpack.c.h.b16 %v211
    %v695 = vunpack.c.l.b16 %v212
    %v696 = vunpack.c.l.b16 %v213
    %v697 = vunpack.c.h.b16 %v213
    %v698 = vunpack.c.l.b16 %v214
    %v699 = vunpack.c.l.b16 %v215
    %v700 = vunpack.c.h.b16 %v215
    %v701 = vunpack.c.l.b16 %v216
    %v702 = vunpack.c.l.b16 %v217
    %v703 = vunpack.c.h.b16 %v217
    %v704 = vunpack.c.l.b16 %v218
    %v705 = vunpack.c.l.b16 %v219
    %v706 = vunpack.c.h.b16 %v219
    %v707 = vunpack.c.l.b16 %v220
    %v708 = vunpack.c.l.b16 %v221
    %v709 = vunpack.c.h.b16 %v221
    %v710 = vunpack.c.l.b16 %v222
    %v711 = vunpack.c.l.b16 %v223
    %v712 = vunpack.c.h.b16 %v223
    %v713 = vunpack.c.l.b16 %v224
    %v714 = vunpack.c.l.b16 %v225
    %v715 = vunpack.c.h.b16 %v225
    %v716 = vunpack.c.l.b16 %v226
    %v717 = vunpack.c.l.b16 %v227
    %v718 = vunpack.c.h.b16 %v227
    %v719 = vunpack.c.l.b16 %v228
    %v720 = vunpack.c.l.b16 %v229
    %v721 = vunpack.c.h.b16 %v229
    %v722 = vunpack.c.l.b16 %v230
    %v723 = vunpack.c.l.b16 %v231
    %v724 = vunpack.c.h.b16 %v231
    %v725 = vunpack.c.l.b16 %v232
    %v726 = vunpack.c.l.b16 %v233
    %v727 = vunpack.c.h.b16 %v233
    %v728 = vunpack.c.l.b16 %v234
    %v729 = vunpack.c.l.b16 %v235
    %v730 = vunpack.c.h.b16 %v235
    %v731 = vunpack.c.l.b16 %v236
    %v732 = vunpack.c.l.b16 %v237
    %v733 = vunpack.c.h.b16 %v237
    %v734 = vunpack.c.l.b16 %v238
    %v735 = vunpack.c.l.b16 %v239
    %v736 = vunpack.c.h.b16 %v239
    %v737 = vunpack.c.l.b16 %v240
    %v738 = vunpack.c.l.b16 %v241
    %v739 = vunpack.c.h.b16 %v241
    %v740 = vunpack.c.l.b16 %v242
    %v741 = vunpack.c.l.b16 %v243
    %v742 = vunpack.c.h.b16 %v243
    %v743 = vunpack.c.l.b16 %v244
    %v744 = vunpack.c.l.b16 %v245
    %v745 = vunpack.c.h.b16 %v245
    %v746 = vunpack.c.l.b16 %v246
    %v747 = vunpack.c.l.b16 %v247
    %v748 = vunpack.c.h.b16 %v247
    %v749 = vunpack.c.l.b16 %v248
    %v750 = vunpack.c.l.b16 %v249
    %v751 = vunpack.c.h.b16 %v249
    %v752 = vunpack.c.l.b16 %v250
    %v753 = vunpack.c.l.b16 %v251
    %v754 = vunpack.c.h.b16 %v251
    %v755 = vunpack.c.l.b16 %v252
    %v756 = vpack.c.b16 %v471, %v468
    %v757 = vpack.c.b16 %v472, %v469
    %v758 = vpack.c.b16 %v473, %v470
    %v759 = vpack.c.b16 %v477, %v474
    %v760 = vpack.c.b16 %v478, %v475
    %v761 = vpack.c.b16 %v479, %v476
    %v762 = vpack.c.b16 %v483, %v480
    %v763 = vpack.c.b16 %v484, %v481
    %v764 = vpack.c.b16 %v485, %v482
    %v765 = vpack.c.b16 %v489, %v486
    %v766 = vpack.c.b16 %v490, %v487
    %v767 = vpack.c.b16 %v491, %v488
    %v768 = vpack.c.b16 %v495, %v492
    %v769 = vpack.c.b16 %v496, %v493
    %v770 = vpack.c.b16 %v497, %v494
    %v771 = vpack.c.b16 %v501, %v498
    %v772 = vpack.c.b16 %v502, %v499
    %v773 = vpack.c.b16 %v503, %v500
    %v774 = vpack.c.b16 %v507, %v504
    %v775 = vpack.c.b16 %v508, %v505
    %v776 = vpack.c.b16 %v509, %v506
    %v777 = vpack.c.b16 %v513, %v510
    %v778 = vpack.c.b16 %v514, %v511
    %v779 = vpack.c.b16 %v515, %v512
    %v780 = vpack.c.b16 %v519, %v516
    %v781 = vpack.c.b16 %v520, %v517
    %v782 = vpack.c.b16 %v521, %v518
    %v783 = vpack.c.b16 %v525, %v522
    %v784 = vpack.c.b16 %v526, %v523
    %v785 = vpack.c.b16 %v527, %v524
    %v786 = vpack.c.b16 %v531, %v528
    %v787 = vpack.c.b16 %v532, %v529
    %v788 = vpack.c.b16 %v533, %v530
    %v789 = vpack.c.b16 %v537, %v534
    %v790 = vpack.c.b16 %v538, %v535
    %v791 = vpack.c.b16 %v539, %v536
    %v792 = vpack.c.b16 %v543, %v540
    %v793 = vpack.c.b16 %v544, %v541
    %v794 = vpack.c.b16 %v545, %v542
    %v795 = vpack.c.b16 %v549, %v546
    %v796 = vpack.c.b16 %v550, %v547
    %v797 = vpack.c.b16 %v551, %v548
    %v798 = vpack.c.b16 %v555, %v552
    %v799 = vpack.c.b16 %v556, %v553
    %v800 = vpack.c.b16 %v557, %v554
    %v801 = vpack.c.b16 %v561, %v558
    %v802 = vpack.c.b16 %v562, %v559
    %v803 = vpack.c.b16 %v563, %v560
    %v804 = vpack.c.b16 %v567, %v564
    %v805 = vpack.c.b16 %v568, %v565
    %v806 = vpack.c.b16 %v569, %v566
    %v807 = vpack.c.b16 %v573, %v570
    %v808 = vpack.c.b16 %v574, %v571
    %v809 = vpack.c.b16 %v575, %v572
    %v810 = vpack.c.b16 %v579, %v576
    %v811 = vpack.c.b16 %v580, %v577
    %v812 = vpack.c.b16 %v581, %v578
    %v813 = vpack.c.b16 %v585, %v582
    %v814 = vpack.c.b16 %v586, %v583
    %v815 = vpack.c.b16 %v587, %v584
    %v816 = vpack.c.b16 %v591, %v588
    %v817 = vpack.c.b16 %v592, %v589
    %v818 = vpack.c.b16 %v593, %v590
    %v819 = vpack.c.b16 %v597, %v594
    %v820 = vpack.c.b16 %v598, %v595
    %v821 = vpack.c.b16 %v599, %v596
    %v822 = vpack.c.b16 %v603, %v600
    %v823 = vpack.c.b16 %v604, %v601
    %v824 = vpack.c.b16 %v605, %v602
    %v825 = vpack.c.b16 %v609, %v606
    %v826 = vpack.c.b16 %v610, %v607
    %v827 = vpack.c.b16 %v611, %v608
    %v828 = vpack.c.b16 %v615, %v612
    %v829 = vpack.c.b16 %v616, %v613
    %v830 = vpack.c.b16 %v617, %v614
    %v831 = vpack.c.b16 %v621, %v618
    %v832 = vpack.c.b16 %v622, %v619
    %v833 = vpack.c.b16 %v623, %v620
    %v834 = vpack.c.b16 %v627, %v624
    %v835 = vpack.c.b16 %v628, %v625
    %v836 = vpack.c.b16 %v629, %v626
    %v837 = vpack.c.b16 %v633, %v630
    %v838 = vpack.c.b16 %v634, %v631
    %v839 = vpack.c.b16 %v635, %v632
    %v840 = vpack.c.b16 %v639, %v636
    %v841 = vpack.c.b16 %v640, %v637
    %v842 = vpack.c.b16 %v641, %v638
    %v843 = vpack.c.b16 %v645, %v642
    %v844 = vpack.c.b16 %v646, %v643
    %v845 = vpack.c.b16 %v647, %v644
    %v846 = vpack.c.b16 %v651, %v648
    %v847 = vpack.c.b16 %v652, %v649
    %v848 = vpack.c.b16 %v653, %v650
    %v849 = vpack.c.b16 %v657, %v654
    %v850 = vpack.c.b16 %v658, %v655
    %v851 = vpack.c.b16 %v659, %v656
    %v852 = vpack.c.b16 %v663, %v660
    %v853 = vpack.c.b16 %v664, %v661
    %v854 = vpack.c.b16 %v665, %v662
    %v855 = vpack.c.b16 %v669, %v666
    %v856 = vpack.c.b16 %v670, %v667
    %v857 = vpack.c.b16 %v671, %v668
    %v858 = vpack.c.b16 %v675, %v672
    %v859 = vpack.c.b16 %v676, %v673
    %v860 = vpack.c.b16 %v677, %v674
    %v861 = vpack.c.b16 %v681, %v678
    %v862 = vpack.c.b16 %v682, %v679
    %v863 = vpack.c.b16 %v683, %v680
    %v864 = vpack.c.b16 %v687, %v684
    %v865 = vpack.c.b16 %v688, %v685
    %v866 = vpack.c.b16 %v689, %v686
    %v867 = vpack.c.b16 %v693, %v690
    %v868 = vpack.c.b16 %v694, %v691
    %v869 = vpack.c.b16 %v695, %v692
    %v870 = vpack.c.b16 %v699, %v696
    %v871 = vpack.c.b16 %v700, %v697
    %v872 = vpack.c.b16 %v701, %v698
    %v873 = vpack.c.b16 %v705, %v702
    %v874 = vpack.c.b16 %v706, %v703
    %v875 = vpack.c.b16 %v707, %v704
    %v876 = vpack.c.b16 %v711, %v708
    %v877 = vpack.c.b16 %v712, %v709
    %v878 = vpack.c.b16 %v713, %v710
    %v879 = vpack.c.b16 %v717, %v714
    %v880 = vpack.c.b16 %v718, %v715
    %v881 = vpack.c.b16 %v719, %v716
    %v882 = vpack.c.b16 %v723, %v720
    %v883 = vpack.c.b16 %v724, %v721
    %v884 = vpack.c.b16 %v725, %v722
    %v885 = vpack.c.b16 %v729, %v726
    %v886 = vpack.c.b16 %v730, %v727
    %v887 = vpack.c.b16 %v731, %v728
    %v888 = vpack.c.b16 %v735, %v732
    %v889 = vpack.c.b16 %v736, %v733
    %v890 = vpack.c.b16 %v737, %v734
    %v891 = vpack.c.b16 %v741, %v738
    %v892 = vpack.c.b16 %v742, %v739
    %v893 = vpack.c.b16 %v743, %v740
    %v894 = vpack.c.b16 %v747, %v744
    %v895 = vpack.c.b16 %v748, %v745
    %v896 = vpack.c.b16 %v749, %v746
    %v897 = vpack.c.b16 %v753, %v750
    %v898 = vpack.c.b16 %v754, %v751
    %v899 = vpack.c.b16 %v755, %v752
    %1044 = vmatprep.subr.bf16.mxu0 %v778
    %1045 = vmatpush1.bf16.msra.mxu0 %v777
    %1046 = vmatprep.subr.bf16.mxu0 %v775
    %1047 = vmatpush1.bf16.msra.mxu0 %v774
    %1048 = vmatprep.subr.bf16.mxu0 %v772
    %1049 = vmatpush1.bf16.msra.mxu0 %v771
    %1050 = vmatprep.subr.bf16.mxu0 %v769
    %1051 = vmatpush1.bf16.msra.mxu0 %v768
    %1052 = vmatprep.subr.bf16.mxu0 %v766
    %1053 = vmatpush1.bf16.msra.mxu0 %v765
    %1054 = vmatprep.subr.bf16.mxu0 %v763
    %1055 = vmatpush1.bf16.msra.mxu0 %v762
    %1056 = vmatprep.subr.bf16.mxu0 %v760
    %1057 = vmatpush1.bf16.msra.mxu0 %v759
    %1058 = vmatprep.subr.bf16.mxu0 %v757
    %1059 = vmatpush1.bf16.msra.mxu0 %v756
    %1060 = vmatprep.subr.bf16.mxu0 %v802
    %1061 = vmatpush2.bf16.msra.mxu0 %v801
    %1062 = vmatprep.subr.bf16.mxu0 %v799
    %1063 = vmatpush2.bf16.msra.mxu0 %v798
    %1064 = vmatprep.subr.bf16.mxu0 %v796
    %1065 = vmatpush2.bf16.msra.mxu0 %v795
    %1066 = vmatprep.subr.bf16.mxu0 %v793
    %1067 = vmatpush2.bf16.msra.mxu0 %v792
    %1068 = vmatprep.subr.bf16.mxu0 %v790
    %1069 = vmatpush2.bf16.msra.mxu0 %v789
    %1070 = vmatprep.subr.bf16.mxu0 %v787
    %1071 = vmatpush2.bf16.msra.mxu0 %v786
    %1072 = vmatprep.subr.bf16.mxu0 %v784
    %1073 = vmatpush2.bf16.msra.mxu0 %v783
    %1074 = vmatprep.subr.bf16.mxu0 %v781
    %1075 = vmatpush2.bf16.msra.mxu0 %v780
    %1076 = vmatprep.mubr.bf16.mxu0 %v255
    %1077 = vmatmul.mubr.bf16.gmra.mxu0 %v254
    %v1078 = vpop.f32.mrf.mxu0
    %v1079 = vadd.f32 %v264, %v1078
    %v1080 = vpop.f32.mrf.mxu0
    %v1081 = vadd.f32 %v268, %v1080
    %v1082 = vpop.f32.mrf.mxu0
    %v1083 = vpop.f32.mrf.mxu0
    %1084 = vdwg.mxu0
    %1085 = vmatprep.subr.bf16.mxu0 %v826
    %1086 = vmatpush1.bf16.msra.mxu0 %v825
    %1087 = vmatprep.subr.bf16.mxu0 %v823
    %1088 = vmatpush1.bf16.msra.mxu0 %v822
    %1089 = vmatprep.subr.bf16.mxu0 %v820
    %1090 = vmatpush1.bf16.msra.mxu0 %v819
    %1091 = vmatprep.subr.bf16.mxu0 %v817
    %1092 = vmatpush1.bf16.msra.mxu0 %v816
    %1093 = vmatprep.subr.bf16.mxu0 %v814
    %1094 = vmatpush1.bf16.msra.mxu0 %v813
    %1095 = vmatprep.subr.bf16.mxu0 %v811
    %1096 = vmatpush1.bf16.msra.mxu0 %v810
    %1097 = vmatprep.subr.bf16.mxu0 %v808
    %1098 = vmatpush1.bf16.msra.mxu0 %v807
    %1099 = vmatprep.subr.bf16.mxu0 %v805
    %1100 = vmatpush1.bf16.msra.mxu0 %v804
    %1101 = vmatprep.subr.bf16.mxu0 %v850
    %1102 = vmatpush2.bf16.msra.mxu0 %v849
    %1103 = vmatprep.subr.bf16.mxu0 %v847
    %1104 = vmatpush2.bf16.msra.mxu0 %v846
    %1105 = vmatprep.subr.bf16.mxu0 %v844
    %1106 = vmatpush2.bf16.msra.mxu0 %v843
    %1107 = vmatprep.subr.bf16.mxu0 %v841
    %1108 = vmatpush2.bf16.msra.mxu0 %v840
    %1109 = vmatprep.subr.bf16.mxu0 %v838
    %1110 = vmatpush2.bf16.msra.mxu0 %v837
    %1111 = vmatprep.subr.bf16.mxu0 %v835
    %1112 = vmatpush2.bf16.msra.mxu0 %v834
    %1113 = vmatprep.subr.bf16.mxu0 %v832
    %1114 = vmatpush2.bf16.msra.mxu0 %v831
    %1115 = vmatprep.subr.bf16.mxu0 %v829
    %1116 = vmatpush2.bf16.msra.mxu0 %v828
    %1117 = vmatprep.mubr.bf16.mxu0 %v257
    %1118 = vmatmul.mubr.bf16.gmra.mxu0 %v256
    %v1119 = vpop.f32.mrf.mxu0
    %v1120 = vadd.f32 %v1079, %v1119
    %v1121 = vpop.f32.mrf.mxu0
    %v1122 = vadd.f32 %v1081, %v1121
    %v1123 = vpop.f32.mrf.mxu0
    %v1124 = vpop.f32.mrf.mxu0
    %1125 = vdwg.mxu0
    %1126 = vmatprep.subr.bf16.mxu0 %v874
    %1127 = vmatpush1.bf16.msra.mxu0 %v873
    %1128 = vmatprep.subr.bf16.mxu0 %v871
    %1129 = vmatpush1.bf16.msra.mxu0 %v870
    %1130 = vmatprep.subr.bf16.mxu0 %v868
    %1131 = vmatpush1.bf16.msra.mxu0 %v867
    %1132 = vmatprep.subr.bf16.mxu0 %v865
    %1133 = vmatpush1.bf16.msra.mxu0 %v864
    %1134 = vmatprep.subr.bf16.mxu0 %v862
    %1135 = vmatpush1.bf16.msra.mxu0 %v861
    %1136 = vmatprep.subr.bf16.mxu0 %v859
    %1137 = vmatpush1.bf16.msra.mxu0 %v858
    %1138 = vmatprep.subr.bf16.mxu0 %v856
    %1139 = vmatpush1.bf16.msra.mxu0 %v855
    %1140 = vmatprep.subr.bf16.mxu0 %v853
    %1141 = vmatpush1.bf16.msra.mxu0 %v852
    %1142 = vmatprep.subr.bf16.mxu0 %v898
    %1143 = vmatpush2.bf16.msra.mxu0 %v897
    %1144 = vmatprep.subr.bf16.mxu0 %v895
    %1145 = vmatpush2.bf16.msra.mxu0 %v894
    %1146 = vmatprep.subr.bf16.mxu0 %v892
    %1147 = vmatpush2.bf16.msra.mxu0 %v891
    %1148 = vmatprep.subr.bf16.mxu0 %v889
    %1149 = vmatpush2.bf16.msra.mxu0 %v888
    %1150 = vmatprep.subr.bf16.mxu0 %v886
    %1151 = vmatpush2.bf16.msra.mxu0 %v885
    %1152 = vmatprep.subr.bf16.mxu0 %v883
    %1153 = vmatpush2.bf16.msra.mxu0 %v882
    %1154 = vmatprep.subr.bf16.mxu0 %v880
    %1155 = vmatpush2.bf16.msra.mxu0 %v879
    %1156 = vmatprep.subr.bf16.mxu0 %v877
    %1157 = vmatpush2.bf16.msra.mxu0 %v876
    %1158 = vmatprep.mubr.bf16.mxu0 %v259
    %1159 = vmatmul.mubr.bf16.gmra.mxu0 %v258
    %v1160 = vpop.f32.mrf.mxu0
    %v1161 = vadd.f32 %v1120, %v1160
    %v1162 = vpop.f32.mrf.mxu0
    %v1163 = vadd.f32 %v1122, %v1162
    %v1164 = vpop.f32.mrf.mxu0
    %v1165 = vpop.f32.mrf.mxu0
    %1166 = vdwg.mxu0
    %1167 = vmatprep.subr.bf16.mxu0 0
    %1168 = vmatpush1.bf16.msra.mxu0 %v779
    %1169 = vmatprep.subr.bf16.mxu0 0
    %1170 = vmatpush1.bf16.msra.mxu0 %v776
    %1171 = vmatprep.subr.bf16.mxu0 0
    %1172 = vmatpush1.bf16.msra.mxu0 %v773
    %1173 = vmatprep.subr.bf16.mxu0 0
    %1174 = vmatpush1.bf16.msra.mxu0 %v770
    %1175 = vmatprep.subr.bf16.mxu0 0
    %1176 = vmatpush1.bf16.msra.mxu0 %v767
    %1177 = vmatprep.subr.bf16.mxu0 0
    %1178 = vmatpush1.bf16.msra.mxu0 %v764
    %1179 = vmatprep.subr.bf16.mxu0 0
    %1180 = vmatpush1.bf16.msra.mxu0 %v761
    %1181 = vmatprep.subr.bf16.mxu0 0
    %1182 = vmatpush1.bf16.msra.mxu0 %v758
    %1183 = vmatprep.subr.bf16.mxu0 0
    %1184 = vmatpush2.bf16.msra.mxu0 %v803
    %1185 = vmatprep.subr.bf16.mxu0 0
    %1186 = vmatpush2.bf16.msra.mxu0 %v800
    %1187 = vmatprep.subr.bf16.mxu0 0
    %1188 = vmatpush2.bf16.msra.mxu0 %v797
    %1189 = vmatprep.subr.bf16.mxu0 0
    %1190 = vmatpush2.bf16.msra.mxu0 %v794
    %1191 = vmatprep.subr.bf16.mxu0 0
    %1192 = vmatpush2.bf16.msra.mxu0 %v791
    %1193 = vmatprep.subr.bf16.mxu0 0
    %1194 = vmatpush2.bf16.msra.mxu0 %v788
    %1195 = vmatprep.subr.bf16.mxu0 0
    %1196 = vmatpush2.bf16.msra.mxu0 %v785
    %1197 = vmatprep.subr.bf16.mxu0 0
    %1198 = vmatpush2.bf16.msra.mxu0 %v782
    %1199 = vmatprep.mubr.bf16.mxu0 %v255
    %1200 = vmatmul.mubr.bf16.gmra.mxu0 %v254
    %v1201 = vpop.f32.mrf.mxu0
    %v1202 = vadd.f32 %v272, %v1201
    %v1203 = vpop.f32.mrf.mxu0
    %v1204 = vpop.f32.mrf.mxu0
    %v1205 = vpop.f32.mrf.mxu0
    %1206 = vdwg.mxu0
    %1207 = vmatprep.subr.bf16.mxu0 0
    %1208 = vmatpush1.bf16.msra.mxu0 %v827
    %1209 = vmatprep.subr.bf16.mxu0 0
    %1210 = vmatpush1.bf16.msra.mxu0 %v824
    %1211 = vmatprep.subr.bf16.mxu0 0
    %1212 = vmatpush1.bf16.msra.mxu0 %v821
    %1213 = vmatprep.subr.bf16.mxu0 0
    %1214 = vmatpush1.bf16.msra.mxu0 %v818
    %1215 = vmatprep.subr.bf16.mxu0 0
    %1216 = vmatpush1.bf16.msra.mxu0 %v815
    %1217 = vmatprep.subr.bf16.mxu0 0
    %1218 = vmatpush1.bf16.msra.mxu0 %v812
    %1219 = vmatprep.subr.bf16.mxu0 0
    %1220 = vmatpush1.bf16.msra.mxu0 %v809
    %1221 = vmatprep.subr.bf16.mxu0 0
    %1222 = vmatpush1.bf16.msra.mxu0 %v806
    %1223 = vmatprep.subr.bf16.mxu0 0
    %1224 = vmatpush2.bf16.msra.mxu0 %v851
    %1225 = vmatprep.subr.bf16.mxu0 0
    %1226 = vmatpush2.bf16.msra.mxu0 %v848
    %1227 = vmatprep.subr.bf16.mxu0 0
    %1228 = vmatpush2.bf16.msra.mxu0 %v845
    %1229 = vmatprep.subr.bf16.mxu0 0
    %1230 = vmatpush2.bf16.msra.mxu0 %v842
    %1231 = vmatprep.subr.bf16.mxu0 0
    %1232 = vmatpush2.bf16.msra.mxu0 %v839
    %1233 = vmatprep.subr.bf16.mxu0 0
    %1234 = vmatpush2.bf16.msra.mxu0 %v836
    %1235 = vmatprep.subr.bf16.mxu0 0
    %1236 = vmatpush2.bf16.msra.mxu0 %v833
    %1237 = vmatprep.subr.bf16.mxu0 0
    %1238 = vmatpush2.bf16.msra.mxu0 %v830
    %1239 = vmatprep.mubr.bf16.mxu0 %v257
    %1240 = vmatmul.mubr.bf16.gmra.mxu0 %v256
    %v1241 = vpop.f32.mrf.mxu0
    %v1242 = vadd.f32 %v1202, %v1241
    %v1243 = vpop.f32.mrf.mxu0
    %v1244 = vpop.f32.mrf.mxu0
    %v1245 = vpop.f32.mrf.mxu0
    %1246 = vdwg.mxu0
    %1247 = vmatprep.subr.bf16.mxu0 0
    %1248 = vmatpush1.bf16.msra.mxu0 %v875
    %1249 = vmatprep.subr.bf16.mxu0 0
    %1250 = vmatpush1.bf16.msra.mxu0 %v872
    %1251 = vmatprep.subr.bf16.mxu0 0
    %1252 = vmatpush1.bf16.msra.mxu0 %v869
    %1253 = vmatprep.subr.bf16.mxu0 0
    %1254 = vmatpush1.bf16.msra.mxu0 %v866
    %1255 = vmatprep.subr.bf16.mxu0 0
    %1256 = vmatpush1.bf16.msra.mxu0 %v863
    %1257 = vmatprep.subr.bf16.mxu0 0
    %1258 = vmatpush1.bf16.msra.mxu0 %v860
    %1259 = vmatprep.subr.bf16.mxu0 0
    %1260 = vmatpush1.bf16.msra.mxu0 %v857
    %1261 = vmatprep.subr.bf16.mxu0 0
    %1262 = vmatpush1.bf16.msra.mxu0 %v854
    %1263 = vmatprep.subr.bf16.mxu0 0
    %1264 = vmatpush2.bf16.msra.mxu0 %v899
    %1265 = vmatprep.subr.bf16.mxu0 0
    %1266 = vmatpush2.bf16.msra.mxu0 %v896
    %1267 = vmatprep.subr.bf16.mxu0 0
    %1268 = vmatpush2.bf16.msra.mxu0 %v893
    %1269 = vmatprep.subr.bf16.mxu0 0
    %1270 = vmatpush2.bf16.msra.mxu0 %v890
    %1271 = vmatprep.subr.bf16.mxu0 0
    %1272 = vmatpush2.bf16.msra.mxu0 %v887
    %1273 = vmatprep.subr.bf16.mxu0 0
    %1274 = vmatpush2.bf16.msra.mxu0 %v884
    %1275 = vmatprep.subr.bf16.mxu0 0
    %1276 = vmatpush2.bf16.msra.mxu0 %v881
    %1277 = vmatprep.subr.bf16.mxu0 0
    %1278 = vmatpush2.bf16.msra.mxu0 %v878
    %1279 = vmatprep.mubr.bf16.mxu0 %v259
    %1280 = vmatmul.mubr.bf16.gmra.mxu0 %v258
    %v1281 = vpop.f32.mrf.mxu0
    %v1282 = vadd.f32 %v1242, %v1281
    %v1283 = vpop.f32.mrf.mxu0
    %v1284 = vpop.f32.mrf.mxu0
    %v1285 = vpop.f32.mrf.mxu0
    %1286 = vdwg.mxu0
    %v1287 = vmax.f32 %v1161, 0.0
    %v1288 = vmax.f32 %v1163, 0.0
    %v1289 = vmax.f32 %v1282, 0.0
    %v1290 = vld [vmem:[#allocation4] sm:$0xf]
    %v1291 = vld [vmem:[#allocation4 + $0x4] sm:$0xf]
    %v1292 = vld [vmem:[#allocation4 + $0x8] sm:$0xf]
    %v1293 = vld [vmem:[#allocation4 + $0xc] sm:$0xf]
    %v1294 = vld [vmem:[#allocation4 + $0x10] sm:$0xf]
    %v1295 = vld [vmem:[#allocation4 + $0x14] sm:$0xf]
    %v1296 = vld [vmem:[#allocation4 + $0x18] sm:$0xf]
    %v1297 = vld [vmem:[#allocation4 + $0x1c] sm:$0xf]
    %v1298 = vld [vmem:[#allocation4 + $0x20] sm:$0xf]
    %v1299 = vld [vmem:[#allocation4 + $0x24] sm:$0xf]
    %v1300 = vld [vmem:[#allocation4 + $0x28] sm:$0xf]
    %v1301 = vld [vmem:[#allocation4 + $0x2c] sm:$0xf]
    %v1302 = vld [vmem:[#allocation4 + $0x30] sm:$0xf]
    %v1303 = vld [vmem:[#allocation4 + $0x34] sm:$0xf]
    %v1304 = vld [vmem:[#allocation4 + $0x38] sm:$0xf]
    %v1305 = vld [vmem:[#allocation4 + $0x3c] sm:$0xf]
    %v1306 = vld [vmem:[#allocation4 + $0x40] sm:$0xf]
    %v1307 = vld [vmem:[#allocation4 + $0x44] sm:$0xf]
    %v1308 = vld [vmem:[#allocation4 + $0x48] sm:$0xf]
    %v1309 = vld [vmem:[#allocation4 + $0x4c] sm:$0xf]
    %v1310 = vld [vmem:[#allocation4 + $0x50] sm:$0xf]
    %v1311 = vld [vmem:[#allocation4 + $0x54] sm:$0xf]
    %v1312 = vld [vmem:[#allocation4 + $0x58] sm:$0xf]
    %v1313 = vld [vmem:[#allocation4 + $0x5c] sm:$0xf]
    %v1314 = vld [vmem:[#allocation4 + $0x60] sm:$0xf]
    %v1315 = vld [vmem:[#allocation4 + $0x64] sm:$0xf]
    %v1316 = vld [vmem:[#allocation4 + $0x68] sm:$0xf]
    %v1317 = vld [vmem:[#allocation4 + $0x6c] sm:$0xf]
    %v1318 = vld [vmem:[#allocation4 + $0x70] sm:$0xf]
    %v1319 = vld [vmem:[#allocation4 + $0x74] sm:$0xf]
    %v1320 = vld [vmem:[#allocation4 + $0x78] sm:$0xf]
    %v1321 = vld [vmem:[#allocation4 + $0x7c] sm:$0xf]
    %v1322 = vld [vmem:[#allocation4 + $0x80] sm:$0xf]
    %v1323 = vld [vmem:[#allocation4 + $0x84] sm:$0xf]
    %v1324 = vld [vmem:[#allocation4 + $0x88] sm:$0xf]
    %v1325 = vld [vmem:[#allocation4 + $0x8c] sm:$0xf]
    %v1326 = vld [vmem:[#allocation4 + $0x90] sm:$0xf]
    %v1327 = vld [vmem:[#allocation4 + $0x94] sm:$0xf]
    %v1328 = vld [vmem:[#allocation4 + $0x98] sm:$0xf]
    %v1329 = vld [vmem:[#allocation4 + $0x9c] sm:$0xf]
    %v1330 = vld [vmem:[#allocation4 + $0xa0] sm:$0xf]
    %v1331 = vld [vmem:[#allocation4 + $0xa4] sm:$0xf]
    %v1332 = vld [vmem:[#allocation4 + $0xa8] sm:$0xf]
    %v1333 = vld [vmem:[#allocation4 + $0xac] sm:$0xf]
    %v1334 = vld [vmem:[#allocation4 + $0xb0] sm:$0xf]
    %v1335 = vld [vmem:[#allocation4 + $0xb4] sm:$0xf]
    %v1336 = vld [vmem:[#allocation4 + $0xb8] sm:$0xf]
    %v1337 = vld [vmem:[#allocation4 + $0xbc] sm:$0xf]
    %v1338 = vld [vmem:[%s4] sm:$0x1]
    %v1339 = vpack.c.bf16 %v1287, %v1287
    %v1340 = vpack.c.bf16 %v1288, %v1288
    %v1341 = vpack.c.bf16 %v1289, %v1289
    %v1343 = vlaneseq
    %v1344 = vshrl.u32 %v1343, 7
    %v1345 = vsub.s32 0, %v1344
    %v1346 = vrot.slane %v1338, %v1345
    %v1396 = vunpack.c.l.b16 %v1290
    %v1397 = vunpack.c.l.b16 %v1291
    %v1398 = vunpack.c.l.b16 %v1292
    %v1399 = vunpack.c.l.b16 %v1293
    %v1400 = vunpack.c.l.b16 %v1294
    %v1401 = vunpack.c.l.b16 %v1295
    %v1402 = vunpack.c.l.b16 %v1296
    %v1403 = vunpack.c.l.b16 %v1297
    %v1404 = vunpack.c.l.b16 %v1298
    %v1405 = vunpack.c.l.b16 %v1299
    %v1406 = vunpack.c.l.b16 %v1300
    %v1407 = vunpack.c.l.b16 %v1301
    %v1408 = vunpack.c.l.b16 %v1302
    %v1409 = vunpack.c.l.b16 %v1303
    %v1410 = vunpack.c.l.b16 %v1304
    %v1411 = vunpack.c.l.b16 %v1305
    %v1412 = vunpack.c.l.b16 %v1306
    %v1413 = vunpack.c.l.b16 %v1307
    %v1414 = vunpack.c.l.b16 %v1308
    %v1415 = vunpack.c.l.b16 %v1309
    %v1416 = vunpack.c.l.b16 %v1310
    %v1417 = vunpack.c.l.b16 %v1311
    %v1418 = vunpack.c.l.b16 %v1312
    %v1419 = vunpack.c.l.b16 %v1313
    %v1420 = vunpack.c.l.b16 %v1314
    %v1421 = vunpack.c.l.b16 %v1315
    %v1422 = vunpack.c.l.b16 %v1316
    %v1423 = vunpack.c.l.b16 %v1317
    %v1424 = vunpack.c.l.b16 %v1318
    %v1425 = vunpack.c.l.b16 %v1319
    %v1426 = vunpack.c.l.b16 %v1320
    %v1427 = vunpack.c.l.b16 %v1321
    %v1428 = vunpack.c.l.b16 %v1322
    %v1429 = vunpack.c.l.b16 %v1323
    %v1430 = vunpack.c.l.b16 %v1324
    %v1431 = vunpack.c.l.b16 %v1325
    %v1432 = vunpack.c.l.b16 %v1326
    %v1433 = vunpack.c.l.b16 %v1327
    %v1434 = vunpack.c.l.b16 %v1328
    %v1435 = vunpack.c.l.b16 %v1329
    %v1436 = vunpack.c.l.b16 %v1330
    %v1437 = vunpack.c.l.b16 %v1331
    %v1438 = vunpack.c.l.b16 %v1332
    %v1439 = vunpack.c.l.b16 %v1333
    %v1440 = vunpack.c.l.b16 %v1334
    %v1441 = vunpack.c.l.b16 %v1335
    %v1442 = vunpack.c.l.b16 %v1336
    %v1443 = vunpack.c.l.b16 %v1337
    %v1444 = vpack.c.b16 %v1397, %v1396
    %v1445 = vpack.c.b16 %v1399, %v1398
    %v1446 = vpack.c.b16 %v1401, %v1400
    %v1447 = vpack.c.b16 %v1403, %v1402
    %v1448 = vpack.c.b16 %v1405, %v1404
    %v1449 = vpack.c.b16 %v1407, %v1406
    %v1450 = vpack.c.b16 %v1409, %v1408
    %v1451 = vpack.c.b16 %v1411, %v1410
    %v1452 = vpack.c.b16 %v1413, %v1412
    %v1453 = vpack.c.b16 %v1415, %v1414
    %v1454 = vpack.c.b16 %v1417, %v1416
    %v1455 = vpack.c.b16 %v1419, %v1418
    %v1456 = vpack.c.b16 %v1421, %v1420
    %v1457 = vpack.c.b16 %v1423, %v1422
    %v1458 = vpack.c.b16 %v1425, %v1424
    %v1459 = vpack.c.b16 %v1427, %v1426
    %v1460 = vpack.c.b16 %v1429, %v1428
    %v1461 = vpack.c.b16 %v1431, %v1430
    %v1462 = vpack.c.b16 %v1433, %v1432
    %v1463 = vpack.c.b16 %v1435, %v1434
    %v1464 = vpack.c.b16 %v1437, %v1436
    %v1465 = vpack.c.b16 %v1439, %v1438
    %v1466 = vpack.c.b16 %v1441, %v1440
    %v1467 = vpack.c.b16 %v1443, %v1442
    %1492 = vmatprep.subr.bf16.mxu0 0
    %1493 = vmatpush1.bf16.msra.mxu0 %v1451
    %1494 = vmatprep.subr.bf16.mxu0 0
    %1495 = vmatpush1.bf16.msra.mxu0 %v1450
    %1496 = vmatprep.subr.bf16.mxu0 0
    %1497 = vmatpush1.bf16.msra.mxu0 %v1449
    %1498 = vmatprep.subr.bf16.mxu0 0
    %1499 = vmatpush1.bf16.msra.mxu0 %v1448
    %1500 = vmatprep.subr.bf16.mxu0 0
    %1501 = vmatpush1.bf16.msra.mxu0 %v1447
    %1502 = vmatprep.subr.bf16.mxu0 0
    %1503 = vmatpush1.bf16.msra.mxu0 %v1446
    %1504 = vmatprep.subr.bf16.mxu0 0
    %1505 = vmatpush1.bf16.msra.mxu0 %v1445
    %1506 = vmatprep.subr.bf16.mxu0 0
    %1507 = vmatpush1.bf16.msra.mxu0 %v1444
    %1508 = vmatprep.subr.bf16.mxu0 0
    %1509 = vmatpush2.bf16.msra.mxu0 %v1459
    %1510 = vmatprep.subr.bf16.mxu0 0
    %1511 = vmatpush2.bf16.msra.mxu0 %v1458
    %1512 = vmatprep.subr.bf16.mxu0 0
    %1513 = vmatpush2.bf16.msra.mxu0 %v1457
    %1514 = vmatprep.subr.bf16.mxu0 0
    %1515 = vmatpush2.bf16.msra.mxu0 %v1456
    %1516 = vmatprep.subr.bf16.mxu0 0
    %1517 = vmatpush2.bf16.msra.mxu0 %v1455
    %1518 = vmatprep.subr.bf16.mxu0 0
    %1519 = vmatpush2.bf16.msra.mxu0 %v1454
    %1520 = vmatprep.subr.bf16.mxu0 0
    %1521 = vmatpush2.bf16.msra.mxu0 %v1453
    %1522 = vmatprep.subr.bf16.mxu0 0
    %1523 = vmatpush2.bf16.msra.mxu0 %v1452
    %1524 = vmatprep.mubr.bf16.mxu0 %v1340
    %1525 = vmatmul.mubr.bf16.gmra.mxu0 %v1339
    %v1526 = vpop.f32.mrf.mxu0
    %v1527 = vadd.f32 %v1346, %v1526
    %v1528 = vpop.f32.mrf.mxu0
    %v1529 = vpop.f32.mrf.mxu0
    %v1530 = vpop.f32.mrf.mxu0
    %1531 = vdwg.mxu0
    %1532 = vmatprep.subr.bf16.mxu0 0
    %1533 = vmatpush1.bf16.msra.mxu0 %v1467
    %1534 = vmatprep.subr.bf16.mxu0 0
    %1535 = vmatpush1.bf16.msra.mxu0 %v1466
    %1536 = vmatprep.subr.bf16.mxu0 0
    %1537 = vmatpush1.bf16.msra.mxu0 %v1465
    %1538 = vmatprep.subr.bf16.mxu0 0
    %1539 = vmatpush1.bf16.msra.mxu0 %v1464
    %1540 = vmatprep.subr.bf16.mxu0 0
    %1541 = vmatpush1.bf16.msra.mxu0 %v1463
    %1542 = vmatprep.subr.bf16.mxu0 0
    %1543 = vmatpush1.bf16.msra.mxu0 %v1462
    %1544 = vmatprep.subr.bf16.mxu0 0
    %1545 = vmatpush1.bf16.msra.mxu0 %v1461
    %1546 = vmatprep.subr.bf16.mxu0 0
    %1547 = vmatpush1.bf16.msra.mxu0 %v1460
    %1548 = vmatprep.subr.bf16.mxu0 0
    %1549 = vmatpush2.bf16.msra.mxu0 0
    %1550 = vmatprep.subr.bf16.mxu0 0
    %1551 = vmatpush2.bf16.msra.mxu0 0
    %1552 = vmatprep.subr.bf16.mxu0 0
    %1553 = vmatpush2.bf16.msra.mxu0 0
    %1554 = vmatprep.subr.bf16.mxu0 0
    %1555 = vmatpush2.bf16.msra.mxu0 0
    %1556 = vmatprep.subr.bf16.mxu0 0
    %1557 = vmatpush2.bf16.msra.mxu0 0
    %1558 = vmatprep.subr.bf16.mxu0 0
    %1559 = vmatpush2.bf16.msra.mxu0 0
    %1560 = vmatprep.subr.bf16.mxu0 0
    %1561 = vmatpush2.bf16.msra.mxu0 0
    %1562 = vmatprep.subr.bf16.mxu0 0
    %1563 = vmatpush2.bf16.msra.mxu0 0
    %1564 = vmatprep.mubr.bf16.mxu0 0
    %1565 = vmatmul.mubr.bf16.gmra.mxu0 %v1341
    %v1566 = vpop.f32.mrf.mxu0
    %v1567 = vadd.f32 %v1527, %v1566
    %v1568 = vpop.f32.mrf.mxu0
    %v1569 = vpop.f32.mrf.mxu0
    %v1570 = vpop.f32.mrf.mxu0
    %1571 = vdwg.mxu0
    %v1572 = vmax.f32 %v1567, 0.0
    %v1573 = vld [vmem:[%s5] sm:$0xf]
    %v1574 = vld [vmem:[%s5 + $0x4] sm:$0xf]
    %v1575 = vld [vmem:[%s5 + $0x8] sm:$0xf]
    %v1576 = vld [vmem:[%s5 + $0xc] sm:$0xf]
    %v1577 = vld [vmem:[%s5 + $0x10] sm:$0xf]
    %v1578 = vld [vmem:[%s5 + $0x14] sm:$0xf]
    %v1579 = vld [vmem:[%s5 + $0x18] sm:$0xf]
    %v1580 = vld [vmem:[%s5 + $0x1c] sm:$0xf]
    %v1581 = vld [vmem:[%s5 + $0x20] sm:$0xf]
    %v1582 = vld [vmem:[%s5 + $0x24] sm:$0xf]
    %v1583 = vld [vmem:[%s5 + $0x28] sm:$0xf]
    %v1584 = vld [vmem:[%s5 + $0x2c] sm:$0xf]
    %v1585 = vld [vmem:[%s5 + $0x30] sm:$0xf]
    %v1586 = vld [vmem:[%s5 + $0x34] sm:$0xf]
    %v1587 = vld [vmem:[%s5 + $0x38] sm:$0xf]
    %v1588 = vld [vmem:[%s5 + $0x3c] sm:$0xf]
    %v1589 = vld [vmem:[%s6] sm:$0x1]
    %v1590 = vpack.c.bf16 %v1572, %v1572
    %v1592 = vlaneseq
    %v1593 = vshrl.u32 %v1592, 7
    %v1594 = vsub.s32 0, %v1593
    %v1595 = vrot.slane %v1589, %v1594
    %v1613 = vunpack.c.l.b16 %v1573
    %v1614 = vunpack.c.l.b16 %v1574
    %v1615 = vunpack.c.l.b16 %v1575
    %v1616 = vunpack.c.l.b16 %v1576
    %v1617 = vunpack.c.l.b16 %v1577
    %v1618 = vunpack.c.l.b16 %v1578
    %v1619 = vunpack.c.l.b16 %v1579
    %v1620 = vunpack.c.l.b16 %v1580
    %v1621 = vunpack.c.l.b16 %v1581
    %v1622 = vunpack.c.l.b16 %v1582
    %v1623 = vunpack.c.l.b16 %v1583
    %v1624 = vunpack.c.l.b16 %v1584
    %v1625 = vunpack.c.l.b16 %v1585
    %v1626 = vunpack.c.l.b16 %v1586
    %v1627 = vunpack.c.l.b16 %v1587
    %v1628 = vunpack.c.l.b16 %v1588
    %v1629 = vpack.c.b16 %v1614, %v1613
    %v1630 = vpack.c.b16 %v1616, %v1615
    %v1631 = vpack.c.b16 %v1618, %v1617
    %v1632 = vpack.c.b16 %v1620, %v1619
    %v1633 = vpack.c.b16 %v1622, %v1621
    %v1634 = vpack.c.b16 %v1624, %v1623
    %v1635 = vpack.c.b16 %v1626, %v1625
    %v1636 = vpack.c.b16 %v1628, %v1627
    %1645 = vmatprep.subr.bf16.mxu0 0
    %1646 = vmatpush1.bf16.msra.mxu0 %v1636
    %1647 = vmatprep.subr.bf16.mxu0 0
    %1648 = vmatpush1.bf16.msra.mxu0 %v1635
    %1649 = vmatprep.subr.bf16.mxu0 0
    %1650 = vmatpush1.bf16.msra.mxu0 %v1634
    %1651 = vmatprep.subr.bf16.mxu0 0
    %1652 = vmatpush1.bf16.msra.mxu0 %v1633
    %1653 = vmatprep.subr.bf16.mxu0 0
    %1654 = vmatpush1.bf16.msra.mxu0 %v1632
    %1655 = vmatprep.subr.bf16.mxu0 0
    %1656 = vmatpush1.bf16.msra.mxu0 %v1631
    %1657 = vmatprep.subr.bf16.mxu0 0
    %1658 = vmatpush1.bf16.msra.mxu0 %v1630
    %1659 = vmatprep.subr.bf16.mxu0 0
    %1660 = vmatpush1.bf16.msra.mxu0 %v1629
    %1661 = vmatprep.subr.bf16.mxu0 0
    %1662 = vmatpush2.bf16.msra.mxu0 0
    %1663 = vmatprep.subr.bf16.mxu0 0
    %1664 = vmatpush2.bf16.msra.mxu0 0
    %1665 = vmatprep.subr.bf16.mxu0 0
    %1666 = vmatpush2.bf16.msra.mxu0 0
    %1667 = vmatprep.subr.bf16.mxu0 0
    %1668 = vmatpush2.bf16.msra.mxu0 0
    %1669 = vmatprep.subr.bf16.mxu0 0
    %1670 = vmatpush2.bf16.msra.mxu0 0
    %1671 = vmatprep.subr.bf16.mxu0 0
    %1672 = vmatpush2.bf16.msra.mxu0 0
    %1673 = vmatprep.subr.bf16.mxu0 0
    %1674 = vmatpush2.bf16.msra.mxu0 0
    %1675 = vmatprep.subr.bf16.mxu0 0
    %1676 = vmatpush2.bf16.msra.mxu0 0
    %1677 = vmatprep.mubr.bf16.mxu0 0
    %1678 = vmatmul.mubr.bf16.gmra.mxu0 %v1590
    %v1679 = vpop.f32.mrf.mxu0
    %v1680 = vadd.f32 %v1595, %v1679
    %v1681 = vpop.f32.mrf.mxu0
    %v1682 = vpop.f32.mrf.mxu0
    %v1683 = vpop.f32.mrf.mxu0
    %1684 = vdwg.mxu0
    %v1685 = vmax.f32 %v1680, 0.0
    %1686 = vst [vmem:[%s7] sm:$0xff] %v1685
    // Predicated region
    $region38: #{forward.1} parent=1 // pred_check
      _
    $region39: #{forward.1} parent=1 // pred_check_branch
      %1688 = sbr.rel (0) target = $region41
    $region40: #{forward.1} parent=1 // pred_region
      _
    $region41: #{forward.1} parent=1 // pred_fallthru
      _
    // Predicated region
    $region42: #{forward.1} parent=1 // pred_check
      _
    $region43: #{forward.1} parent=1 // pred_check_branch
      %1690 = sbr.rel (0) target = $region45
    $region44: #{forward.1} parent=1 // pred_region
      _
    $region45: #{forward.1} parent=1 // pred_fallthru
      _
    %1691 = vsyncpa [#allocation3], 1
    %1692 = vsyncpa [#allocation5], 1

</llo_original>
